<compile_context>
chip_gen: v5e
topology: v5e:2x2
jax: 0.10.0
libtpu: 0.0.40
codegen_flags: <defaults>
</compile_context>

<pallas_src>
import math
import functools

import jax
import jax.numpy as jnp
from jax.experimental import pallas as pl
from jax.experimental.pallas import tpu as pltpu


# ---------------------------------------------------------------------------
# Kernel 1a: fused Q/K/V projection (distinct query/key/value inputs).
# One grid step = (batch, seq-tile).  Outputs are written head-major
# (B, H, S, d_k) so the attention kernel needs no XLA transpose in between.
# ---------------------------------------------------------------------------
def qkv_proj_kernel(xq_ref, xk_ref, xv_ref,
                    wq_ref, wk_ref, wv_ref,
                    bq_ref, bk_ref, bv_ref,
                    q_ref, k_ref, v_ref, *, num_heads: int, d_k: int):
    # bf16 operands, f32 MXU accumulation, f32 bias add.  1/sqrt(d_k) is
    # already folded into wq/bq on the host.
    q = jnp.dot(xq_ref[...], wq_ref[...], preferred_element_type=jnp.float32) + bq_ref[0]
    k = jnp.dot(xk_ref[...], wk_ref[...], preferred_element_type=jnp.float32) + bk_ref[0]
    v = jnp.dot(xv_ref[...], wv_ref[...], preferred_element_type=jnp.float32) + bv_ref[0]
    qb = q.astype(q_ref.dtype)
    kb = k.astype(k_ref.dtype)
    vb = v.astype(v_ref.dtype)
    for h in range(num_heads):             # static -> unrolls; per-head lane slice
        sl = slice(h * d_k, (h + 1) * d_k)
        q_ref[h] = qb[:, sl]
        k_ref[h] = kb[:, sl]
        v_ref[h] = vb[:, sl]


# ---------------------------------------------------------------------------
# Kernel 1b: self-attention fast path.  query is key is value, so the input
# is read once and multiplied by a fused (D, 3D) weight [wq|wk|wv].
# ---------------------------------------------------------------------------
def qkv_proj_self_kernel(x_ref, w_ref, b_ref,
                         q_ref, k_ref, v_ref, *, num_heads: int, d_k: int):
    d_model = num_heads * d_k
    y = jnp.dot(x_ref[...], w_ref[...], preferred_element_type=jnp.float32) + b_ref[0]
    qb = y[:, :d_model].astype(q_ref.dtype)
    kb = y[:, d_model:2 * d_model].astype(k_ref.dtype)
    vb = y[:, 2 * d_model:].astype(v_ref.dtype)
    for h in range(num_heads):
        sl = slice(h * d_k, (h + 1) * d_k)
        q_ref[h] = qb[:, sl]
        k_ref[h] = kb[:, sl]
        v_ref[h] = vb[:, sl]


# ---------------------------------------------------------------------------
# Kernel 2: flash attention (online softmax over kv tiles) + fused W_o.
# Grid = (batch, q-tile, kv-tile); kv-tile is the reduction ("arbitrary") axis.
# kv_resident=True keeps the whole per-batch K/V block in VMEM (index map
# depends only on b) and slices the current kv tile in-kernel with pl.ds.
# ---------------------------------------------------------------------------
def flash_attn_out_kernel(q_ref, k_ref, v_ref, wo_ref, bo_ref, out_ref,
                          m_sc, l_sc, acc_sc, out_acc,
                          *, num_heads: int, d_k: int, tk: int,
                          kv_resident: bool):
    kt = pl.program_id(2)

    @pl.when(kt == 0)
    def _init():
        m_sc[...] = jnp.full(m_sc.shape, -jnp.inf, m_sc.dtype)
        l_sc[...] = jnp.zeros(l_sc.shape, l_sc.dtype)
        acc_sc[...] = jnp.zeros(acc_sc.shape, acc_sc.dtype)

    q = q_ref[...]                          # (H, TQ, d_k) bf16, pre-scaled by 1/sqrt(d_k)
    if kv_resident:
        start = pl.multiple_of(kt * tk, tk)
        k = k_ref[:, pl.ds(start, tk), :]   # (H, TK, d_k) sliced from resident block
        v = v_ref[:, pl.ds(start, tk), :]
    else:
        k = k_ref[...]                      # (H, TK, d_k) streamed tile
        v = v_ref[...]

    # All heads in one leading-batch matmul; f32 MXU accumulation.
    s = jnp.einsum("hqd,hkd->hqk", q, k,
                   preferred_element_type=jnp.float32)       # (H, TQ, TK)

    m_prev = m_sc[...]
    m_new = jnp.maximum(m_prev, jnp.max(s, axis=-1, keepdims=True))
    alpha = jnp.exp(m_prev - m_new)                           # rescale old stats
    p = jnp.exp(s - m_new)                                    # f32 unnormalized probs
    # TODO(synk): attention-weight dropout skipped (eval-mode semantics); mask=None.

    l_sc[...] = alpha * l_sc[...] + jnp.sum(p, axis=-1, keepdims=True)
    acc_sc[...] = alpha * acc_sc[...] + jnp.einsum(
        "hqk,hkd->hqd", p.astype(v.dtype), v,                 # bf16 PV matmul
        preferred_element_type=jnp.float32)
    m_sc[...] = m_new

    @pl.when(kt == pl.num_programs(2) - 1)
    def _finalize():
        # Fused output projection accumulated into a (tq, D) f32 VMEM scratch:
        # per-head (tq, d_k) live values only, no (tq, D) vreg spills.
        out_acc[...] = jnp.broadcast_to(bo_ref[0], out_acc.shape)
        for h in range(num_heads):          # static -> unrolls
            inv_l = pl.reciprocal(l_sc[h], approx=True)       # EUP slot
            ctx_h = (acc_sc[h] * inv_l).astype(wo_ref.dtype)  # (tq, d_k) bf16
            out_acc[...] += jnp.dot(ctx_h, wo_ref[h * d_k:(h + 1) * d_k, :],
                                    preferred_element_type=jnp.float32)
        # TODO(synk): for large D (>~ S/2) a separate full-depth (tq,D)x(D,D)
        # W_o matmul would fill the 256-deep MXU better than per-head d_k slabs.
        out_ref[...] = out_acc[...].astype(out_ref.dtype)


# ---------------------------------------------------------------------------
# Wrapper
# ---------------------------------------------------------------------------
def _pick_tile(s: int, preferred: int = 256) -> int:
    if s <= preferred:
        return s                        # full dim -> always a legal block
    t = preferred
    while t >= 8:
        if s % t == 0:
            return t
        t //= 2
    # TODO(synk): pad S to a multiple of 128 (+ mask) instead of full-S blocks.
    return s


def _vmem_capacity_bytes() -> int:
    try:
        return int(pltpu.get_tpu_info().vmem_capacity_bytes)
    except Exception:
        return 64 * 2 ** 20             # conservative fallback: v7x physical VMEM


def _vmem_limit_bytes(est: int, cap: int) -> int:
    # Generation-aware: ~1/8 headroom for Mosaic internal scratch; allows large
    # limits on v5e/v6e (128 MiB) while staying under v7x's 64 MiB.
    ceiling = (cap * 7) // 8
    return int(min(ceiling, max(8 * 2 ** 20, 2 * est)))


def multi_head_attention(query, key, value, params, *, num_heads: int,
                         ts: int = None, tq: int = None, tk: int = None,
                         kv_resident: bool = None):
    """query/key/value: (B, S, D) float32.  params: dict of f32 weights/biases."""
    B, S, D = query.shape
    assert D % num_heads == 0, "d_model must be divisible by num_heads"
    d_k = D // num_heads
    scale = 1.0 / math.sqrt(d_k)

    ts = ts or _pick_tile(S)
    tq = tq or _pick_tile(S)
    tk = tk or _pick_tile(S)
    assert S % ts == 0 and S % tq == 0 and S % tk == 0

    cap = _vmem_capacity_bytes()
    cdtype = jnp.bfloat16

    # Fold 1/sqrt(d_k) into W_q / b_q in f32 before the bf16 cast.
    wq = (params["wq"] * scale).astype(cdtype)
    bq = (params["bq"] * scale).astype(jnp.float32)
    wk = params["wk"].astype(cdtype)
    bk = params["bk"].astype(jnp.float32)
    wv = params["wv"].astype(cdtype)
    bv = params["bv"].astype(jnp.float32)
    wo = params["wo"].astype(cdtype)
    bo = params["bo"].astype(jnp.float32)

    self_attn = (query is key) and (key is value)

    # ---------------- 1) fused Q/K/V projection -> head-major outputs -------
    x_spec = pl.BlockSpec((pl.Squeezed(), ts, D), lambda b, s: (b, s, 0))
    head_spec = pl.BlockSpec((pl.Squeezed(), num_heads, ts, d_k),
                             lambda b, s: (b, 0, s, 0))
    out_shapes = (jax.ShapeDtypeStruct((B, num_heads, S, d_k), cdtype),) * 3
    qkv_grid = (B, S // ts)
    proj_flops = 3 * 2 * B * S * D * D
    # NOTE: weight/bias BlockSpecs use constant index maps -> fetched once and
    # VMEM-resident across the grid (single-buffering them is a further VMEM
    # saving for very large D).

    if self_attn:
        xq = query.astype(cdtype)
        wqkv = jnp.concatenate([wq, wk, wv], axis=1)       # (D, 3D) bf16
        bqkv = jnp.concatenate([bq, bk, bv], axis=1)       # (1, 3D) f32
        w_spec = pl.BlockSpec((D, 3 * D), lambda b, s: (0, 0))
        b_spec = pl.BlockSpec((1, 3 * D), lambda b, s: (0, 0))
        est1 = (2 * ts * D * 2                 # input tile, double-buffered
                + 2 * 3 * ts * D * 2           # 3 head-major output tiles
                + 2 * (3 * D * D * 2 + 3 * D * 4))
        proj_bytes = 4 * B * S * D * 2 + 3 * D * D * 2 + 3 * D * 4
        q4, k4, v4 = pl.pallas_call(
            functools.partial(qkv_proj_self_kernel, num_heads=num_heads, d_k=d_k),
            out_shape=out_shapes,
            grid_spec=pltpu.PrefetchScalarGridSpec(
                num_scalar_prefetch=0, grid=qkv_grid,
                in_specs=[x_spec, w_spec, b_spec],
                out_specs=[head_spec, head_spec, head_spec]),
            compiler_params=pltpu.CompilerParams(
                dimension_semantics=("parallel", "parallel"),
                vmem_limit_bytes=_vmem_limit_bytes(est1, cap)),
            cost_estimate=pl.CostEstimate(
                flops=proj_flops, transcendentals=0, bytes_accessed=proj_bytes),
        )(xq, wqkv, bqkv)
    else:
        xq = query.astype(cdtype)
        xk = key.astype(cdtype)
        xv = value.astype(cdtype)
        w_spec = pl.BlockSpec((D, D), lambda b, s: (0, 0))
        b_spec = pl.BlockSpec((1, D), lambda b, s: (0, 0))
        est1 = (2 * 3 * ts * D * 2 + 2 * 3 * ts * D * 2
                + 2 * (3 * D * D * 2 + 3 * D * 4))
        proj_bytes = 6 * B * S * D * 2 + 3 * D * D * 2 + 3 * D * 4
        q4, k4, v4 = pl.pallas_call(
            functools.partial(qkv_proj_kernel, num_heads=num_heads, d_k=d_k),
            out_shape=out_shapes,
            grid_spec=pltpu.PrefetchScalarGridSpec(
                num_scalar_prefetch=0, grid=qkv_grid,
                in_specs=[x_spec, x_spec, x_spec,
                          w_spec, w_spec, w_spec,
                          b_spec, b_spec, b_spec],
                out_specs=[head_spec, head_spec, head_spec]),
            compiler_params=pltpu.CompilerParams(
                dimension_semantics=("parallel", "parallel"),
                vmem_limit_bytes=_vmem_limit_bytes(est1, cap)),
            cost_estimate=pl.CostEstimate(
                flops=proj_flops, transcendentals=0, bytes_accessed=proj_bytes),
        )(xq, xk, xv, wq, wk, wv, bq, bk, bv)

    # ---------------- 2) flash attention + fused output projection ----------
    if kv_resident is None:
        # K+V resident for one batch (bf16, double-buffered) must leave room
        # for weights, q/out tiles and scratch; generation-aware via cap.
        kv_resident = (2 * 2 * 2 * S * D) <= cap // 3

    q_spec = pl.BlockSpec((pl.Squeezed(), num_heads, tq, d_k),
                          lambda b, i, j: (b, 0, i, 0))
    if kv_resident:
        kv_spec = pl.BlockSpec((pl.Squeezed(), num_heads, S, d_k),
                               lambda b, i, j: (b, 0, 0, 0))
        kv_buf_bytes = 2 * 2 * 2 * S * D
        kv_hbm_bytes = 2 * B * S * D * 2
    else:
        kv_spec = pl.BlockSpec((pl.Squeezed(), num_heads, tk, d_k),
                               lambda b, i, j: (b, 0, j, 0))
        kv_buf_bytes = 2 * 2 * 2 * tk * D
        kv_hbm_bytes = 2 * B * S * D * 2 * (S // tq)
    wo_spec = pl.BlockSpec((D, D), lambda b, i, j: (0, 0))
    bo_spec = pl.BlockSpec((1, D), lambda b, i, j: (0, 0))
    o_spec = pl.BlockSpec((pl.Squeezed(), tq, D), lambda b, i, j: (b, i, 0))

    out_itemsize = query.dtype.itemsize
    est2 = (2 * num_heads * tq * d_k * 2            # Q tiles, double-buffered
            + kv_buf_bytes                          # K/V buffers
            + 2 * tq * D * out_itemsize             # output tile
            + 2 * (D * D * 2 + D * 4)               # W_o + b_o
            + num_heads * tq * (2 + d_k) * 4        # m/l/acc scratch
            + tq * D * 4                            # fused-W_o accumulator
            + num_heads * tq * tk * 4)              # f32 score temporary
    attn_flops = 4 * B * S * S * D + 2 * B * S * D * D
    attn_bytes = (B * S * D * 2 + kv_hbm_bytes + D * D * 2 + D * 4
                  + B * S * D * out_itemsize)

    out = pl.pallas_call(
        functools.partial(flash_attn_out_kernel, num_heads=num_heads, d_k=d_k,
                          tk=tk, kv_resident=kv_resident),
        out_shape=jax.ShapeDtypeStruct((B, S, D), query.dtype),
        grid_spec=pltpu.PrefetchScalarGridSpec(
            num_scalar_prefetch=0,
            grid=(B, S // tq, S // tk),
            in_specs=[q_spec, kv_spec, kv_spec, wo_spec, bo_spec],
            out_specs=o_spec,
            scratch_shapes=[
                pltpu.VMEM((num_heads, tq, 1), jnp.float32),     # running max m
                pltpu.VMEM((num_heads, tq, 1), jnp.float32),     # running denom l
                pltpu.VMEM((num_heads, tq, d_k), jnp.float32),   # PV accumulator
                pltpu.VMEM((tq, D), jnp.float32),                # fused W_o accum
            ],
        ),
        compiler_params=pltpu.CompilerParams(
            dimension_semantics=("parallel", "parallel", "arbitrary"),
            vmem_limit_bytes=_vmem_limit_bytes(est2, cap)),
        cost_estimate=pl.CostEstimate(
            flops=attn_flops,
            transcendentals=2 * B * num_heads * S * S,
            bytes_accessed=attn_bytes),
    )(q4, k4, v4, wo, bo)

    return out


# ---------------------------------------------------------------------------
# Parameter init + pure-JAX reference (f32)
# ---------------------------------------------------------------------------
def init_params(rng, d_model):
    """Deterministic Kaiming-uniform-like init matching nn.Linear shapes."""
    bound = 1.0 / math.sqrt(d_model)
    keys = jax.random.split(rng, 8)

    def lin(kw, kb):
        w = jax.random.uniform(kw, (d_model, d_model), jnp.float32, -bound, bound)
        b = jax.random.uniform(kb, (1, d_model), jnp.float32, -bound, bound)
        return w, b

    wq, bq = lin(keys[0], keys[1])
    wk, bk = lin(keys[2], keys[3])
    wv, bv = lin(keys[4], keys[5])
    wo, bo = lin(keys[6], keys[7])
    return dict(wq=wq, bq=bq, wk=wk, bk=bk, wv=wv, bv=bv, wo=wo, bo=bo)


def reference_mha(query, key, value, params, *, num_heads: int):
    """Pure-JAX f32 reference mirroring the PyTorch forward (eval mode)."""
    B, S, D = query.shape
    d_k = D // num_heads
    q = query @ params["wq"] + params["bq"][0]
    k = key @ params["wk"] + params["bk"][0]
    v = value @ params["wv"] + params["bv"][0]

    def split(x):
        return x.reshape(B, S, num_heads, d_k).transpose(0, 2, 1, 3)

    q, k, v = split(q), split(k), split(v)
    scores = jnp.einsum("bhqd,bhkd->bhqk", q, k) / math.sqrt(d_k)
    attn = jax.nn.softmax(scores, axis=-1)
    out = jnp.einsum("bhqk,bhkd->bhqd", attn, v)
    out = out.transpose(0, 2, 1, 3).reshape(B, S, D)
    return out @ params["wo"] + params["bo"][0]


if __name__ == "__main__":
    B, S, D, H = 2, 16, 32, 4
    key0 = jax.random.PRNGKey(0)
    kq, kk, kv_, kp = jax.random.split(key0, 4)

    query = jax.random.normal(kq, (B, S, D), jnp.float32)
    key_t = jax.random.normal(kk, (B, S, D), jnp.float32)
    value = jax.random.normal(kv_, (B, S, D), jnp.float32)
    params = init_params(kp, D)

    # Cross-attention with small tiles -> grid (2, 2, 2): exercises the online
    # softmax accumulation and the batch-resident-KV in-kernel pl.ds slicing.
    out = multi_head_attention(query, key_t, value, params, num_heads=H,
                               ts=8, tq=8, tk=8)
    out = jax.block_until_ready(out)
    ref = reference_mha(query, key_t, value, params, num_heads=H)
    assert out.shape == (B, S, D)
    max_err = float(jnp.max(jnp.abs(out - ref)))
    # bf16 operands + approx reciprocal -> loosened tolerance vs f32 reference.
    assert jnp.allclose(out, ref, atol=5e-2, rtol=5e-2), (
        f"mismatch vs reference (max |err| = {max_err})")

    # Self-attention fast path (fused (D, 3D) QKV weight) + streaming-KV path.
    out_sa = multi_head_attention(query, query, query, params, num_heads=H,
                                  ts=8, tq=8, tk=8, kv_resident=False)
    out_sa = jax.block_until_ready(out_sa)
    ref_sa = reference_mha(query, query, query, params, num_heads=H)
    max_err_sa = float(jnp.max(jnp.abs(out_sa - ref_sa)))
    assert jnp.allclose(out_sa, ref_sa, atol=5e-2, rtol=5e-2), (
        f"self-attn mismatch vs reference (max |err| = {max_err_sa})")

    print("KERNEL_OK")
</pallas_src>

<mosaic_0001>
module attributes {stable_mosaic.version = 11 : i64} {
  func.func @qkv_proj_kernel(%arg0: i32, %arg1: i32, %arg2: memref<1x8x32xbf16, #tpu.memory_space<vmem>>, %arg3: memref<1x8x32xbf16, #tpu.memory_space<vmem>>, %arg4: memref<1x8x32xbf16, #tpu.memory_space<vmem>>, %arg5: memref<32x32xbf16, #tpu.memory_space<vmem>>, %arg6: memref<32x32xbf16, #tpu.memory_space<vmem>>, %arg7: memref<32x32xbf16, #tpu.memory_space<vmem>>, %arg8: memref<1x32xf32, #tpu.memory_space<vmem>>, %arg9: memref<1x32xf32, #tpu.memory_space<vmem>>, %arg10: memref<1x32xf32, #tpu.memory_space<vmem>>, %arg11: memref<1x4x8x8xbf16, #tpu.memory_space<vmem>>, %arg12: memref<1x4x8x8xbf16, #tpu.memory_space<vmem>>, %arg13: memref<1x4x8x8xbf16, #tpu.memory_space<vmem>>) attributes {dimension_semantics = [#tpu.dimension_semantics<parallel>, #tpu.dimension_semantics<parallel>], iteration_bounds = array<i64: 2, 2>, scalar_prefetch = 0 : i64, scratch_operands = 0 : i64, tpu.core_type = #tpu.core_type<tc>, window_params = [{transform_indices = @transform_0, window_bounds = array<i64: 1, 8, 32>}, {transform_indices = @transform_1, window_bounds = array<i64: 1, 8, 32>}, {transform_indices = @transform_2, window_bounds = array<i64: 1, 8, 32>}, {pipeline_mode = #tpu.pipeline_mode<synchronous>, transform_indices = @transform_3, window_bounds = array<i64: 32, 32>}, {pipeline_mode = #tpu.pipeline_mode<synchronous>, transform_indices = @transform_4, window_bounds = array<i64: 32, 32>}, {pipeline_mode = #tpu.pipeline_mode<synchronous>, transform_indices = @transform_5, window_bounds = array<i64: 32, 32>}, {pipeline_mode = #tpu.pipeline_mode<synchronous>, transform_indices = @transform_6, window_bounds = array<i64: 1, 32>}, {pipeline_mode = #tpu.pipeline_mode<synchronous>, transform_indices = @transform_7, window_bounds = array<i64: 1, 32>}, {pipeline_mode = #tpu.pipeline_mode<synchronous>, transform_indices = @transform_8, window_bounds = array<i64: 1, 32>}, {transform_indices = @transform_9, window_bounds = array<i64: 1, 4, 8, 8>}, {transform_indices = @transform_10, window_bounds = array<i64: 1, 4, 8, 8>}, {transform_indices = @transform_11, window_bounds = array<i64: 1, 4, 8, 8>}]} {
    %c0 = arith.constant 0 : index
    %c0_0 = arith.constant 0 : index
    %c0_1 = arith.constant 0 : index
    %0 = vector.load %arg2[%c0, %c0_0, %c0_1] : memref<1x8x32xbf16, #tpu.memory_space<vmem>>, vector<1x8x32xbf16>
    %1 = vector.shape_cast %0 : vector<1x8x32xbf16> to vector<8x32xbf16>
    %c0_2 = arith.constant 0 : index
    %c0_3 = arith.constant 0 : index
    %2 = vector.load %arg5[%c0_2, %c0_3] : memref<32x32xbf16, #tpu.memory_space<vmem>>, vector<32x32xbf16>
    %cst = arith.constant dense<0.000000e+00> : vector<8x32xf32>
    %3 = tpu.matmul %1, %2, %cst {dimension_numbers = #tpu.dot_dimension_numbers<[1], [0], [0], [1], [0, 0, 1, 1], [], []>} : vector<8x32xbf16>, vector<32x32xbf16>, vector<8x32xf32> -> vector<8x32xf32>
    %c0_4 = arith.constant 0 : index
    %c0_5 = arith.constant 0 : index
    %4 = vector.load %arg8[%c0_4, %c0_5] : memref<1x32xf32, #tpu.memory_space<vmem>>, vector<1x32xf32>
    %5 = vector.shape_cast %4 : vector<1x32xf32> to vector<32xf32>
    %6 = vector.shape_cast %5 : vector<32xf32> to vector<1x32xf32>
    %7 = vector.broadcast %6 : vector<1x32xf32> to vector<8x32xf32>
    %8 = arith.addf %3, %7 : vector<8x32xf32>
    %c0_6 = arith.constant 0 : index
    %c0_7 = arith.constant 0 : index
    %c0_8 = arith.constant 0 : index
    %9 = vector.load %arg3[%c0_6, %c0_7, %c0_8] : memref<1x8x32xbf16, #tpu.memory_space<vmem>>, vector<1x8x32xbf16>
    %10 = vector.shape_cast %9 : vector<1x8x32xbf16> to vector<8x32xbf16>
    %c0_9 = arith.constant 0 : index
    %c0_10 = arith.constant 0 : index
    %11 = vector.load %arg6[%c0_9, %c0_10] : memref<32x32xbf16, #tpu.memory_space<vmem>>, vector<32x32xbf16>
    %cst_11 = arith.constant dense<0.000000e+00> : vector<8x32xf32>
    %12 = tpu.matmul %10, %11, %cst_11 {dimension_numbers = #tpu.dot_dimension_numbers<[1], [0], [0], [1], [0, 0, 1, 1], [], []>} : vector<8x32xbf16>, vector<32x32xbf16>, vector<8x32xf32> -> vector<8x32xf32>
    %c0_12 = arith.constant 0 : index
    %c0_13 = arith.constant 0 : index
    %13 = vector.load %arg9[%c0_12, %c0_13] : memref<1x32xf32, #tpu.memory_space<vmem>>, vector<1x32xf32>
    %14 = vector.shape_cast %13 : vector<1x32xf32> to vector<32xf32>
    %15 = vector.shape_cast %14 : vector<32xf32> to vector<1x32xf32>
    %16 = vector.broadcast %15 : vector<1x32xf32> to vector<8x32xf32>
    %17 = arith.addf %12, %16 : vector<8x32xf32>
    %c0_14 = arith.constant 0 : index
    %c0_15 = arith.constant 0 : index
    %c0_16 = arith.constant 0 : index
    %18 = vector.load %arg4[%c0_14, %c0_15, %c0_16] : memref<1x8x32xbf16, #tpu.memory_space<vmem>>, vector<1x8x32xbf16>
    %19 = vector.shape_cast %18 : vector<1x8x32xbf16> to vector<8x32xbf16>
    %c0_17 = arith.constant 0 : index
    %c0_18 = arith.constant 0 : index
    %20 = vector.load %arg7[%c0_17, %c0_18] : memref<32x32xbf16, #tpu.memory_space<vmem>>, vector<32x32xbf16>
    %cst_19 = arith.constant dense<0.000000e+00> : vector<8x32xf32>
    %21 = tpu.matmul %19, %20, %cst_19 {dimension_numbers = #tpu.dot_dimension_numbers<[1], [0], [0], [1], [0, 0, 1, 1], [], []>} : vector<8x32xbf16>, vector<32x32xbf16>, vector<8x32xf32> -> vector<8x32xf32>
    %c0_20 = arith.constant 0 : index
    %c0_21 = arith.constant 0 : index
    %22 = vector.load %arg10[%c0_20, %c0_21] : memref<1x32xf32, #tpu.memory_space<vmem>>, vector<1x32xf32>
    %23 = vector.shape_cast %22 : vector<1x32xf32> to vector<32xf32>
    %24 = vector.shape_cast %23 : vector<32xf32> to vector<1x32xf32>
    %25 = vector.broadcast %24 : vector<1x32xf32> to vector<8x32xf32>
    %26 = arith.addf %21, %25 : vector<8x32xf32>
    %27 = arith.truncf %8 : vector<8x32xf32> to vector<8x32xbf16>
    %28 = arith.truncf %17 : vector<8x32xf32> to vector<8x32xbf16>
    %29 = arith.truncf %26 : vector<8x32xf32> to vector<8x32xbf16>
    %30 = vector.extract_strided_slice %27 {offsets = [0, 0], sizes = [8, 8], strides = [1, 1]} : vector<8x32xbf16> to vector<8x8xbf16>
    %c0_22 = arith.constant 0 : index
    %c0_23 = arith.constant 0 : index
    %c0_24 = arith.constant 0 : index
    %c0_25 = arith.constant 0 : index
    %31 = vector.load %arg11[%c0_22, %c0_23, %c0_24, %c0_25] : memref<1x4x8x8xbf16, #tpu.memory_space<vmem>>, vector<1x1x8x8xbf16>
    %32 = vector.shape_cast %31 : vector<1x1x8x8xbf16> to vector<8x8xbf16>
    %33 = vector.shape_cast %30 : vector<8x8xbf16> to vector<1x1x8x8xbf16>
    tpu.vector_store %arg11[%c0_22, %c0_23, %c0_24, %c0_25], %33 {strides = array<i32>} : memref<1x4x8x8xbf16, #tpu.memory_space<vmem>>, vector<1x1x8x8xbf16>,
    %34 = vector.extract_strided_slice %28 {offsets = [0, 0], sizes = [8, 8], strides = [1, 1]} : vector<8x32xbf16> to vector<8x8xbf16>
    %c0_26 = arith.constant 0 : index
    %c0_27 = arith.constant 0 : index
    %c0_28 = arith.constant 0 : index
    %c0_29 = arith.constant 0 : index
    %35 = vector.load %arg12[%c0_26, %c0_27, %c0_28, %c0_29] : memref<1x4x8x8xbf16, #tpu.memory_space<vmem>>, vector<1x1x8x8xbf16>
    %36 = vector.shape_cast %35 : vector<1x1x8x8xbf16> to vector<8x8xbf16>
    %37 = vector.shape_cast %34 : vector<8x8xbf16> to vector<1x1x8x8xbf16>
    tpu.vector_store %arg12[%c0_26, %c0_27, %c0_28, %c0_29], %37 {strides = array<i32>} : memref<1x4x8x8xbf16, #tpu.memory_space<vmem>>, vector<1x1x8x8xbf16>,
    %38 = vector.extract_strided_slice %29 {offsets = [0, 0], sizes = [8, 8], strides = [1, 1]} : vector<8x32xbf16> to vector<8x8xbf16>
    %c0_30 = arith.constant 0 : index
    %c0_31 = arith.constant 0 : index
    %c0_32 = arith.constant 0 : index
    %c0_33 = arith.constant 0 : index
    %39 = vector.load %arg13[%c0_30, %c0_31, %c0_32, %c0_33] : memref<1x4x8x8xbf16, #tpu.memory_space<vmem>>, vector<1x1x8x8xbf16>
    %40 = vector.shape_cast %39 : vector<1x1x8x8xbf16> to vector<8x8xbf16>
    %41 = vector.shape_cast %38 : vector<8x8xbf16> to vector<1x1x8x8xbf16>
    tpu.vector_store %arg13[%c0_30, %c0_31, %c0_32, %c0_33], %41 {strides = array<i32>} : memref<1x4x8x8xbf16, #tpu.memory_space<vmem>>, vector<1x1x8x8xbf16>,
    %42 = vector.extract_strided_slice %27 {offsets = [0, 8], sizes = [8, 8], strides = [1, 1]} : vector<8x32xbf16> to vector<8x8xbf16>
    %c0_34 = arith.constant 0 : index
    %c1 = arith.constant 1 : index
    %c0_35 = arith.constant 0 : index
    %c0_36 = arith.constant 0 : index
    %43 = vector.load %arg11[%c0_34, %c1, %c0_35, %c0_36] : memref<1x4x8x8xbf16, #tpu.memory_space<vmem>>, vector<1x1x8x8xbf16>
    %44 = vector.shape_cast %43 : vector<1x1x8x8xbf16> to vector<8x8xbf16>
    %45 = vector.shape_cast %42 : vector<8x8xbf16> to vector<1x1x8x8xbf16>
    tpu.vector_store %arg11[%c0_34, %c1, %c0_35, %c0_36], %45 {strides = array<i32>} : memref<1x4x8x8xbf16, #tpu.memory_space<vmem>>, vector<1x1x8x8xbf16>,
    %46 = vector.extract_strided_slice %28 {offsets = [0, 8], sizes = [8, 8], strides = [1, 1]} : vector<8x32xbf16> to vector<8x8xbf16>
    %c0_37 = arith.constant 0 : index
    %c1_38 = arith.constant 1 : index
    %c0_39 = arith.constant 0 : index
    %c0_40 = arith.constant 0 : index
    %47 = vector.load %arg12[%c0_37, %c1_38, %c0_39, %c0_40] : memref<1x4x8x8xbf16, #tpu.memory_space<vmem>>, vector<1x1x8x8xbf16>
    %48 = vector.shape_cast %47 : vector<1x1x8x8xbf16> to vector<8x8xbf16>
    %49 = vector.shape_cast %46 : vector<8x8xbf16> to vector<1x1x8x8xbf16>
    tpu.vector_store %arg12[%c0_37, %c1_38, %c0_39, %c0_40], %49 {strides = array<i32>} : memref<1x4x8x8xbf16, #tpu.memory_space<vmem>>, vector<1x1x8x8xbf16>,
    %50 = vector.extract_strided_slice %29 {offsets = [0, 8], sizes = [8, 8], strides = [1, 1]} : vector<8x32xbf16> to vector<8x8xbf16>
    %c0_41 = arith.constant 0 : index
    %c1_42 = arith.constant 1 : index
    %c0_43 = arith.constant 0 : index
    %c0_44 = arith.constant 0 : index
    %51 = vector.load %arg13[%c0_41, %c1_42, %c0_43, %c0_44] : memref<1x4x8x8xbf16, #tpu.memory_space<vmem>>, vector<1x1x8x8xbf16>
    %52 = vector.shape_cast %51 : vector<1x1x8x8xbf16> to vector<8x8xbf16>
    %53 = vector.shape_cast %50 : vector<8x8xbf16> to vector<1x1x8x8xbf16>
    tpu.vector_store %arg13[%c0_41, %c1_42, %c0_43, %c0_44], %53 {strides = array<i32>} : memref<1x4x8x8xbf16, #tpu.memory_space<vmem>>, vector<1x1x8x8xbf16>,
    %54 = vector.extract_strided_slice %27 {offsets = [0, 16], sizes = [8, 8], strides = [1, 1]} : vector<8x32xbf16> to vector<8x8xbf16>
    %c0_45 = arith.constant 0 : index
    %c2 = arith.constant 2 : index
    %c0_46 = arith.constant 0 : index
    %c0_47 = arith.constant 0 : index
    %55 = vector.load %arg11[%c0_45, %c2, %c0_46, %c0_47] : memref<1x4x8x8xbf16, #tpu.memory_space<vmem>>, vector<1x1x8x8xbf16>
    %56 = vector.shape_cast %55 : vector<1x1x8x8xbf16> to vector<8x8xbf16>
    %57 = vector.shape_cast %54 : vector<8x8xbf16> to vector<1x1x8x8xbf16>
    tpu.vector_store %arg11[%c0_45, %c2, %c0_46, %c0_47], %57 {strides = array<i32>} : memref<1x4x8x8xbf16, #tpu.memory_space<vmem>>, vector<1x1x8x8xbf16>,
    %58 = vector.extract_strided_slice %28 {offsets = [0, 16], sizes = [8, 8], strides = [1, 1]} : vector<8x32xbf16> to vector<8x8xbf16>
    %c0_48 = arith.constant 0 : index
    %c2_49 = arith.constant 2 : index
    %c0_50 = arith.constant 0 : index
    %c0_51 = arith.constant 0 : index
    %59 = vector.load %arg12[%c0_48, %c2_49, %c0_50, %c0_51] : memref<1x4x8x8xbf16, #tpu.memory_space<vmem>>, vector<1x1x8x8xbf16>
    %60 = vector.shape_cast %59 : vector<1x1x8x8xbf16> to vector<8x8xbf16>
    %61 = vector.shape_cast %58 : vector<8x8xbf16> to vector<1x1x8x8xbf16>
    tpu.vector_store %arg12[%c0_48, %c2_49, %c0_50, %c0_51], %61 {strides = array<i32>} : memref<1x4x8x8xbf16, #tpu.memory_space<vmem>>, vector<1x1x8x8xbf16>,
    %62 = vector.extract_strided_slice %29 {offsets = [0, 16], sizes = [8, 8], strides = [1, 1]} : vector<8x32xbf16> to vector<8x8xbf16>
    %c0_52 = arith.constant 0 : index
    %c2_53 = arith.constant 2 : index
    %c0_54 = arith.constant 0 : index
    %c0_55 = arith.constant 0 : index
    %63 = vector.load %arg13[%c0_52, %c2_53, %c0_54, %c0_55] : memref<1x4x8x8xbf16, #tpu.memory_space<vmem>>, vector<1x1x8x8xbf16>
    %64 = vector.shape_cast %63 : vector<1x1x8x8xbf16> to vector<8x8xbf16>
    %65 = vector.shape_cast %62 : vector<8x8xbf16> to vector<1x1x8x8xbf16>
    tpu.vector_store %arg13[%c0_52, %c2_53, %c0_54, %c0_55], %65 {strides = array<i32>} : memref<1x4x8x8xbf16, #tpu.memory_space<vmem>>, vector<1x1x8x8xbf16>,
    %66 = vector.extract_strided_slice %27 {offsets = [0, 24], sizes = [8, 8], strides = [1, 1]} : vector<8x32xbf16> to vector<8x8xbf16>
    %c0_56 = arith.constant 0 : index
    %c3 = arith.constant 3 : index
    %c0_57 = arith.constant 0 : index
    %c0_58 = arith.constant 0 : index
    %67 = vector.load %arg11[%c0_56, %c3, %c0_57, %c0_58] : memref<1x4x8x8xbf16, #tpu.memory_space<vmem>>, vector<1x1x8x8xbf16>
    %68 = vector.shape_cast %67 : vector<1x1x8x8xbf16> to vector<8x8xbf16>
    %69 = vector.shape_cast %66 : vector<8x8xbf16> to vector<1x1x8x8xbf16>
    tpu.vector_store %arg11[%c0_56, %c3, %c0_57, %c0_58], %69 {strides = array<i32>} : memref<1x4x8x8xbf16, #tpu.memory_space<vmem>>, vector<1x1x8x8xbf16>,
    %70 = vector.extract_strided_slice %28 {offsets = [0, 24], sizes = [8, 8], strides = [1, 1]} : vector<8x32xbf16> to vector<8x8xbf16>
    %c0_59 = arith.constant 0 : index
    %c3_60 = arith.constant 3 : index
    %c0_61 = arith.constant 0 : index
    %c0_62 = arith.constant 0 : index
    %71 = vector.load %arg12[%c0_59, %c3_60, %c0_61, %c0_62] : memref<1x4x8x8xbf16, #tpu.memory_space<vmem>>, vector<1x1x8x8xbf16>
    %72 = vector.shape_cast %71 : vector<1x1x8x8xbf16> to vector<8x8xbf16>
    %73 = vector.shape_cast %70 : vector<8x8xbf16> to vector<1x1x8x8xbf16>
    tpu.vector_store %arg12[%c0_59, %c3_60, %c0_61, %c0_62], %73 {strides = array<i32>} : memref<1x4x8x8xbf16, #tpu.memory_space<vmem>>, vector<1x1x8x8xbf16>,
    %74 = vector.extract_strided_slice %29 {offsets = [0, 24], sizes = [8, 8], strides = [1, 1]} : vector<8x32xbf16> to vector<8x8xbf16>
    %c0_63 = arith.constant 0 : index
    %c3_64 = arith.constant 3 : index
    %c0_65 = arith.constant 0 : index
    %c0_66 = arith.constant 0 : index
    %75 = vector.load %arg13[%c0_63, %c3_64, %c0_65, %c0_66] : memref<1x4x8x8xbf16, #tpu.memory_space<vmem>>, vector<1x1x8x8xbf16>
    %76 = vector.shape_cast %75 : vector<1x1x8x8xbf16> to vector<8x8xbf16>
    %77 = vector.shape_cast %74 : vector<8x8xbf16> to vector<1x1x8x8xbf16>
    tpu.vector_store %arg13[%c0_63, %c3_64, %c0_65, %c0_66], %77 {strides = array<i32>} : memref<1x4x8x8xbf16, #tpu.memory_space<vmem>>, vector<1x1x8x8xbf16>,
    return
  }
  func.func @transform_0(%arg0: i32, %arg1: i32) -> (i32, i32, i32) {
    %c0_i32 = arith.constant 0 : i32
    %c0_i32_0 = arith.constant 0 : i32
    return %arg0, %arg1, %c0_i32 : i32, i32, i32
  }
  func.func @transform_1(%arg0: i32, %arg1: i32) -> (i32, i32, i32) {
    %c0_i32 = arith.constant 0 : i32
    %c0_i32_0 = arith.constant 0 : i32
    return %arg0, %arg1, %c0_i32 : i32, i32, i32
  }
  func.func @transform_2(%arg0: i32, %arg1: i32) -> (i32, i32, i32) {
    %c0_i32 = arith.constant 0 : i32
    %c0_i32_0 = arith.constant 0 : i32
    return %arg0, %arg1, %c0_i32 : i32, i32, i32
  }
  func.func @transform_3(%arg0: i32, %arg1: i32) -> (i32, i32) {
    %c0_i32 = arith.constant 0 : i32
    %c0_i32_0 = arith.constant 0 : i32
    %c0_i32_1 = arith.constant 0 : i32
    return %c0_i32, %c0_i32_0 : i32, i32
  }
  func.func @transform_4(%arg0: i32, %arg1: i32) -> (i32, i32) {
    %c0_i32 = arith.constant 0 : i32
    %c0_i32_0 = arith.constant 0 : i32
    %c0_i32_1 = arith.constant 0 : i32
    return %c0_i32, %c0_i32_0 : i32, i32
  }
  func.func @transform_5(%arg0: i32, %arg1: i32) -> (i32, i32) {
    %c0_i32 = arith.constant 0 : i32
    %c0_i32_0 = arith.constant 0 : i32
    %c0_i32_1 = arith.constant 0 : i32
    return %c0_i32, %c0_i32_0 : i32, i32
  }
  func.func @transform_6(%arg0: i32, %arg1: i32) -> (i32, i32) {
    %c0_i32 = arith.constant 0 : i32
    %c0_i32_0 = arith.constant 0 : i32
    %c0_i32_1 = arith.constant 0 : i32
    return %c0_i32, %c0_i32_0 : i32, i32
  }
  func.func @transform_7(%arg0: i32, %arg1: i32) -> (i32, i32) {
    %c0_i32 = arith.constant 0 : i32
    %c0_i32_0 = arith.constant 0 : i32
    %c0_i32_1 = arith.constant 0 : i32
    return %c0_i32, %c0_i32_0 : i32, i32
  }
  func.func @transform_8(%arg0: i32, %arg1: i32) -> (i32, i32) {
    %c0_i32 = arith.constant 0 : i32
    %c0_i32_0 = arith.constant 0 : i32
    %c0_i32_1 = arith.constant 0 : i32
    return %c0_i32, %c0_i32_0 : i32, i32
  }
  func.func @transform_9(%arg0: i32, %arg1: i32) -> (i32, i32, i32, i32) {
    %c0_i32 = arith.constant 0 : i32
    %c0_i32_0 = arith.constant 0 : i32
    %c0_i32_1 = arith.constant 0 : i32
    return %arg0, %c0_i32, %arg1, %c0_i32_0 : i32, i32, i32, i32
  }
  func.func @transform_10(%arg0: i32, %arg1: i32) -> (i32, i32, i32, i32) {
    %c0_i32 = arith.constant 0 : i32
    %c0_i32_0 = arith.constant 0 : i32
    %c0_i32_1 = arith.constant 0 : i32
    return %arg0, %c0_i32, %arg1, %c0_i32_0 : i32, i32, i32, i32
  }
  func.func @transform_11(%arg0: i32, %arg1: i32) -> (i32, i32, i32, i32) {
    %c0_i32 = arith.constant 0 : i32
    %c0_i32_0 = arith.constant 0 : i32
    %c0_i32_1 = arith.constant 0 : i32
    return %arg0, %c0_i32, %arg1, %c0_i32_0 : i32, i32, i32, i32
  }
}

</mosaic_0001>

<llo_original>
// kernel: tpu_custom_call.1
$region0: #{tpu_custom_call.1}
  #allocation0 [shape = 'u32[]', space=smem, size = 0x4, offset = 0x4, fixed_abs, tag = 'smem constant byte address 0x4 - core index']
  #allocation1 [shape = 'u32[72,128]{1,0:T(1,128)}', space=vmem, size = 0x9000, scoped, tag = 'internal scratch']
  %s0 = inlined_call_operand.hbm [shape: bf16[2,16,32], index: 0, kind: input, shape index: {}]
  %s1 = inlined_call_operand.hbm [shape: bf16[2,16,32], index: 1, kind: input, shape index: {}]
  %s2 = inlined_call_operand.hbm [shape: bf16[2,16,32], index: 2, kind: input, shape index: {}]
  %s3 = inlined_call_operand.hbm [shape: bf16[32,32], index: 3, kind: input, shape index: {}]
  %s4 = inlined_call_operand.hbm [shape: bf16[32,32], index: 4, kind: input, shape index: {}]
  %s5 = inlined_call_operand.hbm [shape: bf16[32,32], index: 5, kind: input, shape index: {}]
  %s6 = inlined_call_operand.vmem [shape: f32[1,32], index: 6, kind: input, shape index: {}]
  %s7 = inlined_call_operand.vmem [shape: f32[1,32], index: 7, kind: input, shape index: {}]
  %s8 = inlined_call_operand.vmem [shape: f32[1,32], index: 8, kind: input, shape index: {}]
  %s9 = inlined_call_operand.vmem [shape: bf16[2,4,16,8], index: 9, kind: output, shape index: {0}]
  %s10 = inlined_call_operand.vmem [shape: bf16[2,4,16,8], index: 10, kind: output, shape index: {1}]
  %s11 = inlined_call_operand.vmem [shape: bf16[2,4,16,8], index: 11, kind: output, shape index: {2}]
  %12 = xla_tuple %s9, %s10, %s11
  %s13 = sld [smem:[#allocation0]]
  $region220: #{tpu_custom_call.1} parent=0
    _
  %s15 = ssub.s32 1, %s13
  %s16 = scalar_select 0, %s15, %s13
  $region1: #{tpu_custom_call.1} parent=0
    #allocation2 [shape = 'u8[4096]{0}', space=vmem, size = 0x1000, scoped, tag = 'input window, operand 0']
    #allocation3 [shape = 's32[2]{0}', space=sflag, size = 0x8, scoped, tag = 'scoped memory for tpu_custom_call.1']
    #allocation4 [shape = 'u8[4096]{0}', space=vmem, size = 0x1000, scoped, tag = 'input window, operand 1']
    #allocation5 [shape = 's32[2]{0}', space=sflag, size = 0x8, scoped, tag = 'scoped memory for tpu_custom_call.1']
    #allocation6 [shape = 'u8[4096]{0}', space=vmem, size = 0x1000, scoped, tag = 'input window, operand 2']
    #allocation7 [shape = 'u8[8192]{0}', space=vmem, size = 0x2000, scoped, tag = 'input window, operand 3, single buffered']
    #allocation8 [shape = 's32[1]{0}', space=sflag, size = 0x4, scoped, tag = 'scoped memory for tpu_custom_call.1']
    #allocation9 [shape = 'u8[8192]{0}', space=vmem, size = 0x2000, scoped, tag = 'input window, operand 4, single buffered']
    #allocation10 [shape = 'u8[8192]{0}', space=vmem, size = 0x2000, scoped, tag = 'input window, operand 5, single buffered']
    #allocation11 [shape = 's32[1]{0}', space=sflag, size = 0x4, scoped, tag = 'scoped memory for tpu_custom_call.1']
    #allocation12 [shape = 'u8[16384]{0}', space=vmem, size = 0x4000, scoped, tag = 'output window, operand 0']
    #allocation13 [shape = 'u8[16384]{0}', space=vmem, size = 0x4000, scoped, tag = 'output window, operand 1']
    #allocation14 [shape = 'u8[16384]{0}', space=vmem, size = 0x4000, scoped, tag = 'output window, operand 2']
    %17 = vsyncpa [#allocation3], 0
    %s18 = scalar_lea.sflag [#allocation3], 1
    %19 = vsyncpa %s18, 0
    %20 = vsyncpa [#allocation5], 0
    %s21 = scalar_lea.sflag [#allocation5], 1
    %22 = vsyncpa %s21, 0
    %23 = vsyncpa [#allocation8], 0
    %24 = vsyncpa [#allocation11], 0
    loop: start=0, step=1, limit=6
    $region2: #{tpu_custom_call.1} parent=1 // loop_pre_header
      _
    $region3: #{tpu_custom_call.1} parent=1 // loop_header
      %s26 = sphi 0, %s30
      %p27 = scmp.ge.s32.totalorder %s26, 6
      %s33 = sphi 0, %s45
      %s34 = sphi 0, %s41
      %s35 = sphi 0, %s33
      %s36 = sphi 0, %s34
      %s37 = sphi 0, %s35
      %s38 = sphi 0, %s36
      %s50 = sphi 0, %s52
      %s53 = sphi 0, %s50
      %s54 = sphi 0, %s53
      %s70 = sphi 0, %s54
      %s78 = sphi 0, %s80
      %s81 = sphi 0, %s78
      %s82 = sphi 0, %s81
      %s98 = sphi 0, %s82
      %s106 = sphi 0, %s108
      %s109 = sphi 0, %s106
      %s110 = sphi 0, %s109
      %s126 = sphi 0, %s110
      %s130 = sphi 0, %s130
      %s132 = sphi 0, %s130
      %s133 = sphi 0, %s132
      %s147 = sphi 0, %s133
      %s151 = sphi 0, %s151
      %s153 = sphi 0, %s151
      %s154 = sphi 0, %s153
      %s168 = sphi 0, %s154
      %s172 = sphi 0, %s172
      %s174 = sphi 0, %s172
      %s175 = sphi 0, %s174
      %s189 = sphi 0, %s175
      %s193 = sphi 0, %s193
      %s195 = sphi 0, %s193
      %s196 = sphi 0, %s195
      %s210 = sphi 0, %s196
      %s214 = sphi 0, %s214
      %s216 = sphi 0, %s214
      %s217 = sphi 0, %s216
      %s231 = sphi 0, %s217
      %s235 = sphi 0, %s235
      %s237 = sphi 0, %s235
      %s238 = sphi 0, %s237
      %s252 = sphi 0, %s238
      %s260 = sphi 0, %s262
      %s263 = sphi 0, %s260
      %s264 = sphi 0, %s263
      %s280 = sphi 0, %s264
      %s288 = sphi 0, %s290
      %s291 = sphi 0, %s288
      %s292 = sphi 0, %s291
      %s308 = sphi 0, %s292
      %s316 = sphi 0, %s318
      %s319 = sphi 0, %s316
      %s320 = sphi 0, %s319
      %s336 = sphi 0, %s320
    $region4: #{tpu_custom_call.1} parent=1 // loop_header_branch
      %29 = sbr.rel (%p27) target = $region8
    $region5: #{tpu_custom_call.1} parent=1 // loop_body
      %s31 = ssub.s32 %s26, 1
      %s32 = ssub.s32 %s26, 2
      %s39 = sadd.s32 1, %s34
      %p40 = scmp.ge.s32.totalorder %s39, 2
      %s41 = scalar_select %p40, 0, %s39
      %s42 = sadd.s32 1, %s33
      %s43 = scalar_select %p40, %s42, %s33
      %p44 = scmp.ge.s32.totalorder %s43, 2
      %s45 = scalar_select %p44, 0, %s43
      %s46 = ssub.s32 %s33, %s45
      %s47 = ssub.s32 %s34, %s41
      %s48 = sor.u32 %s46, %s47
      %p49 = scmp.eq.s32.totalorder %s48, 0
      %s51 = sadd.s32 %s50, 1
      %s52 = scalar_select %p49, %s50, %s51
      %p55 = pneg %p49
      %p56 = scmp.eq.s32.totalorder %s26, 3
      %p57 = por %p55, %p56
      %p58 = scmp.ne.s32.totalorder %s50, %s53
      %p59 = scmp.eq.s32.totalorder %s26, 0
      %p60 = por %p58, %p59
      %p61 = scmp.ne.s32.totalorder %s50, %s53
      %p62 = scmp.eq.s32.totalorder %s31, 3
      %p63 = por %p61, %p62
      %p64 = scmp.ne.s32.totalorder %s53, %s54
      %p65 = scmp.eq.s32.totalorder %s31, 0
      %p66 = por %p64, %p65
      %p67 = scmp.ne.s32.totalorder %s53, %s54
      %p68 = scmp.eq.s32.totalorder %s32, 3
      %p69 = por %p67, %p68
      %p71 = scmp.ne.s32.totalorder %s54, %s70
      %p72 = scmp.eq.s32.totalorder %s32, 0
      %p73 = por %p71, %p72
      %s74 = ssub.s32 %s33, %s45
      %s75 = ssub.s32 %s34, %s41
      %s76 = sor.u32 %s74, %s75
      %p77 = scmp.eq.s32.totalorder %s76, 0
      %s79 = sadd.s32 %s78, 1
      %s80 = scalar_select %p77, %s78, %s79
      %p83 = pneg %p77
      %p84 = scmp.eq.s32.totalorder %s26, 3
      %p85 = por %p83, %p84
      %p86 = scmp.ne.s32.totalorder %s78, %s81
      %p87 = scmp.eq.s32.totalorder %s26, 0
      %p88 = por %p86, %p87
      %p89 = scmp.ne.s32.totalorder %s78, %s81
      %p90 = scmp.eq.s32.totalorder %s31, 3
      %p91 = por %p89, %p90
      %p92 = scmp.ne.s32.totalorder %s81, %s82
      %p93 = scmp.eq.s32.totalorder %s31, 0
      %p94 = por %p92, %p93
      %p95 = scmp.ne.s32.totalorder %s81, %s82
      %p96 = scmp.eq.s32.totalorder %s32, 3
      %p97 = por %p95, %p96
      %p99 = scmp.ne.s32.totalorder %s82, %s98
      %p100 = scmp.eq.s32.totalorder %s32, 0
      %p101 = por %p99, %p100
      %s102 = ssub.s32 %s33, %s45
      %s103 = ssub.s32 %s34, %s41
      %s104 = sor.u32 %s102, %s103
      %p105 = scmp.eq.s32.totalorder %s104, 0
      %s107 = sadd.s32 %s106, 1
      %s108 = scalar_select %p105, %s106, %s107
      %p111 = pneg %p105
      %p112 = scmp.eq.s32.totalorder %s26, 3
      %p113 = por %p111, %p112
      %p114 = scmp.ne.s32.totalorder %s106, %s109
      %p115 = scmp.eq.s32.totalorder %s26, 0
      %p116 = por %p114, %p115
      %p117 = scmp.ne.s32.totalorder %s106, %s109
      %p118 = scmp.eq.s32.totalorder %s31, 3
      %p119 = por %p117, %p118
      %p120 = scmp.ne.s32.totalorder %s109, %s110
      %p121 = scmp.eq.s32.totalorder %s31, 0
      %p122 = por %p120, %p121
      %p123 = scmp.ne.s32.totalorder %s109, %s110
      %p124 = scmp.eq.s32.totalorder %s32, 3
      %p125 = por %p123, %p124
      %p127 = scmp.ne.s32.totalorder %s110, %s126
      %p128 = scmp.eq.s32.totalorder %s32, 0
      %p129 = por %p127, %p128
      %s131 = sadd.s32 %s130, 1
      %p134 = scmp.eq.s32.totalorder %s26, 3
      %p135 = scmp.ne.s32.totalorder %s130, %s132
      %p136 = scmp.eq.s32.totalorder %s26, 0
      %p137 = por %p135, %p136
      %p138 = scmp.ne.s32.totalorder %s130, %s132
      %p139 = scmp.eq.s32.totalorder %s31, 3
      %p140 = por %p138, %p139
      %p141 = scmp.ne.s32.totalorder %s132, %s133
      %p142 = scmp.eq.s32.totalorder %s31, 0
      %p143 = por %p141, %p142
      %p144 = scmp.ne.s32.totalorder %s132, %s133
      %p145 = scmp.eq.s32.totalorder %s32, 3
      %p146 = por %p144, %p145
      %p148 = scmp.ne.s32.totalorder %s133, %s147
      %p149 = scmp.eq.s32.totalorder %s32, 0
      %p150 = por %p148, %p149
      %s152 = sadd.s32 %s151, 1
      %p155 = scmp.eq.s32.totalorder %s26, 3
      %p156 = scmp.ne.s32.totalorder %s151, %s153
      %p157 = scmp.eq.s32.totalorder %s26, 0
      %p158 = por %p156, %p157
      %p159 = scmp.ne.s32.totalorder %s151, %s153
      %p160 = scmp.eq.s32.totalorder %s31, 3
      %p161 = por %p159, %p160
      %p162 = scmp.ne.s32.totalorder %s153, %s154
      %p163 = scmp.eq.s32.totalorder %s31, 0
      %p164 = por %p162, %p163
      %p165 = scmp.ne.s32.totalorder %s153, %s154
      %p166 = scmp.eq.s32.totalorder %s32, 3
      %p167 = por %p165, %p166
      %p169 = scmp.ne.s32.totalorder %s154, %s168
      %p170 = scmp.eq.s32.totalorder %s32, 0
      %p171 = por %p169, %p170
      %s173 = sadd.s32 %s172, 1
      %p176 = scmp.eq.s32.totalorder %s26, 3
      %p177 = scmp.ne.s32.totalorder %s172, %s174
      %p178 = scmp.eq.s32.totalorder %s26, 0
      %p179 = por %p177, %p178
      %p180 = scmp.ne.s32.totalorder %s172, %s174
      %p181 = scmp.eq.s32.totalorder %s31, 3
      %p182 = por %p180, %p181
      %p183 = scmp.ne.s32.totalorder %s174, %s175
      %p184 = scmp.eq.s32.totalorder %s31, 0
      %p185 = por %p183, %p184
      %p186 = scmp.ne.s32.totalorder %s174, %s175
      %p187 = scmp.eq.s32.totalorder %s32, 3
      %p188 = por %p186, %p187
      %p190 = scmp.ne.s32.totalorder %s175, %s189
      %p191 = scmp.eq.s32.totalorder %s32, 0
      %p192 = por %p190, %p191
      %s194 = sadd.s32 %s193, 1
      %p197 = scmp.eq.s32.totalorder %s26, 3
      %p198 = scmp.ne.s32.totalorder %s193, %s195
      %p199 = scmp.eq.s32.totalorder %s26, 0
      %p200 = por %p198, %p199
      %p201 = scmp.ne.s32.totalorder %s193, %s195
      %p202 = scmp.eq.s32.totalorder %s31, 3
      %p203 = por %p201, %p202
      %p204 = scmp.ne.s32.totalorder %s195, %s196
      %p205 = scmp.eq.s32.totalorder %s31, 0
      %p206 = por %p204, %p205
      %p207 = scmp.ne.s32.totalorder %s195, %s196
      %p208 = scmp.eq.s32.totalorder %s32, 3
      %p209 = por %p207, %p208
      %p211 = scmp.ne.s32.totalorder %s196, %s210
      %p212 = scmp.eq.s32.totalorder %s32, 0
      %p213 = por %p211, %p212
      %s215 = sadd.s32 %s214, 1
      %p218 = scmp.eq.s32.totalorder %s26, 3
      %p219 = scmp.ne.s32.totalorder %s214, %s216
      %p220 = scmp.eq.s32.totalorder %s26, 0
      %p221 = por %p219, %p220
      %p222 = scmp.ne.s32.totalorder %s214, %s216
      %p223 = scmp.eq.s32.totalorder %s31, 3
      %p224 = por %p222, %p223
      %p225 = scmp.ne.s32.totalorder %s216, %s217
      %p226 = scmp.eq.s32.totalorder %s31, 0
      %p227 = por %p225, %p226
      %p228 = scmp.ne.s32.totalorder %s216, %s217
      %p229 = scmp.eq.s32.totalorder %s32, 3
      %p230 = por %p228, %p229
      %p232 = scmp.ne.s32.totalorder %s217, %s231
      %p233 = scmp.eq.s32.totalorder %s32, 0
      %p234 = por %p232, %p233
      %s236 = sadd.s32 %s235, 1
      %p239 = scmp.eq.s32.totalorder %s26, 3
      %p240 = scmp.ne.s32.totalorder %s235, %s237
      %p241 = scmp.eq.s32.totalorder %s26, 0
      %p242 = por %p240, %p241
      %p243 = scmp.ne.s32.totalorder %s235, %s237
      %p244 = scmp.eq.s32.totalorder %s31, 3
      %p245 = por %p243, %p244
      %p246 = scmp.ne.s32.totalorder %s237, %s238
      %p247 = scmp.eq.s32.totalorder %s31, 0
      %p248 = por %p246, %p247
      %p249 = scmp.ne.s32.totalorder %s237, %s238
      %p250 = scmp.eq.s32.totalorder %s32, 3
      %p251 = por %p249, %p250
      %p253 = scmp.ne.s32.totalorder %s238, %s252
      %p254 = scmp.eq.s32.totalorder %s32, 0
      %p255 = por %p253, %p254
      %s256 = ssub.s32 %s33, %s45
      %s257 = ssub.s32 %s34, %s41
      %s258 = sor.u32 %s256, %s257
      %p259 = scmp.eq.s32.totalorder %s258, 0
      %s261 = sadd.s32 %s260, 1
      %s262 = scalar_select %p259, %s260, %s261
      %p265 = pneg %p259
      %p266 = scmp.eq.s32.totalorder %s26, 3
      %p267 = por %p265, %p266
      %p268 = scmp.ne.s32.totalorder %s260, %s263
      %p269 = scmp.eq.s32.totalorder %s26, 0
      %p270 = por %p268, %p269
      %p271 = scmp.ne.s32.totalorder %s260, %s263
      %p272 = scmp.eq.s32.totalorder %s31, 3
      %p273 = por %p271, %p272
      %p274 = scmp.ne.s32.totalorder %s263, %s264
      %p275 = scmp.eq.s32.totalorder %s31, 0
      %p276 = por %p274, %p275
      %p277 = scmp.ne.s32.totalorder %s263, %s264
      %p278 = scmp.eq.s32.totalorder %s32, 3
      %p279 = por %p277, %p278
      %p281 = scmp.ne.s32.totalorder %s264, %s280
      %p282 = scmp.eq.s32.totalorder %s32, 0
      %p283 = por %p281, %p282
      %s284 = ssub.s32 %s33, %s45
      %s285 = ssub.s32 %s34, %s41
      %s286 = sor.u32 %s284, %s285
      %p287 = scmp.eq.s32.totalorder %s286, 0
      %s289 = sadd.s32 %s288, 1
      %s290 = scalar_select %p287, %s288, %s289
      %p293 = pneg %p287
      %p294 = scmp.eq.s32.totalorder %s26, 3
      %p295 = por %p293, %p294
      %p296 = scmp.ne.s32.totalorder %s288, %s291
      %p297 = scmp.eq.s32.totalorder %s26, 0
      %p298 = por %p296, %p297
      %p299 = scmp.ne.s32.totalorder %s288, %s291
      %p300 = scmp.eq.s32.totalorder %s31, 3
      %p301 = por %p299, %p300
      %p302 = scmp.ne.s32.totalorder %s291, %s292
      %p303 = scmp.eq.s32.totalorder %s31, 0
      %p304 = por %p302, %p303
      %p305 = scmp.ne.s32.totalorder %s291, %s292
      %p306 = scmp.eq.s32.totalorder %s32, 3
      %p307 = por %p305, %p306
      %p309 = scmp.ne.s32.totalorder %s292, %s308
      %p310 = scmp.eq.s32.totalorder %s32, 0
      %p311 = por %p309, %p310
      %s312 = ssub.s32 %s33, %s45
      %s313 = ssub.s32 %s34, %s41
      %s314 = sor.u32 %s312, %s313
      %p315 = scmp.eq.s32.totalorder %s314, 0
      %s317 = sadd.s32 %s316, 1
      %s318 = scalar_select %p315, %s316, %s317
      %p321 = pneg %p315
      %p322 = scmp.eq.s32.totalorder %s26, 3
      %p323 = por %p321, %p322
      %p324 = scmp.ne.s32.totalorder %s316, %s319
      %p325 = scmp.eq.s32.totalorder %s26, 0
      %p326 = por %p324, %p325
      %p327 = scmp.ne.s32.totalorder %s316, %s319
      %p328 = scmp.eq.s32.totalorder %s31, 3
      %p329 = por %p327, %p328
      %p330 = scmp.ne.s32.totalorder %s319, %s320
      %p331 = scmp.eq.s32.totalorder %s31, 0
      %p332 = por %p330, %p331
      %p333 = scmp.ne.s32.totalorder %s319, %s320
      %p334 = scmp.eq.s32.totalorder %s32, 3
      %p335 = por %p333, %p334
      %p337 = scmp.ne.s32.totalorder %s320, %s336
      %p338 = scmp.eq.s32.totalorder %s32, 0
      %p339 = por %p337, %p338
      %p340 = scmp.le.s32.totalorder 1, %s26
      %p341 = scmp.lt.s32.totalorder %s26, 5
      %p342 = pnand %p340, %p341
      %p343 = pneg %p342
      // Predicated region
      $region9: #{tpu_custom_call.1} parent=5 // pred_check
        _
      $region10: #{tpu_custom_call.1} parent=5 // pred_check_branch
        %345 = sbr.rel (%p342) target = $region12
      $region11: #{tpu_custom_call.1} parent=5 // pred_region
        %s346 = ssub.s32 %s26, 1
        // Predicated region
        $region13: #{tpu_custom_call.1} parent=11 // pred_check
          %p347 = pneg %p143
        $region14: #{tpu_custom_call.1} parent=11 // pred_check_branch
          %349 = sbr.rel (%p347) target = $region16
        $region15: #{tpu_custom_call.1} parent=11 // pred_region
          %351 = vsyncadd [#allocation8], 0
          %s352 = sshll.u32 %s3, 4
          %s353 = int_to_ptr.hbm [resolvable:$true] %s352
          %s354 = sshll.u32 [#allocation7], 4
          %s355 = int_to_ptr.vmem [resolvable:$true] %s354
          %360 = dma.hbm_to_vmem [thread:$0]  %s353, 256, %s355, [#allocation8], 64, 64, 4
        $region16: #{tpu_custom_call.1} parent=11 // pred_fallthru
          _
        // Predicated region
        $region17: #{tpu_custom_call.1} parent=11 // pred_check
          %p361 = pneg %p164
        $region18: #{tpu_custom_call.1} parent=11 // pred_check_branch
          %363 = sbr.rel (%p361) target = $region20
        $region19: #{tpu_custom_call.1} parent=11 // pred_region
          %365 = vsyncadd [#allocation8], 0
          %s366 = sshll.u32 %s4, 4
          %s367 = int_to_ptr.hbm [resolvable:$true] %s366
          %s368 = sshll.u32 [#allocation9], 4
          %s369 = int_to_ptr.vmem [resolvable:$true] %s368
          %374 = dma.hbm_to_vmem [thread:$0]  %s367, 256, %s369, [#allocation8], 64, 64, 4
        $region20: #{tpu_custom_call.1} parent=11 // pred_fallthru
          _
        // Predicated region
        $region21: #{tpu_custom_call.1} parent=11 // pred_check
          %p375 = pneg %p185
        $region22: #{tpu_custom_call.1} parent=11 // pred_check_branch
          %377 = sbr.rel (%p375) target = $region24
        $region23: #{tpu_custom_call.1} parent=11 // pred_region
          %379 = vsyncadd [#allocation11], 0
          %s380 = sshll.u32 %s5, 4
          %s381 = int_to_ptr.hbm [resolvable:$true] %s380
          %s382 = sshll.u32 [#allocation10], 4
          %s383 = int_to_ptr.vmem [resolvable:$true] %s382
          %388 = dma.hbm_to_vmem [thread:$0]  %s381, 256, %s383, [#allocation11], 64, 64, 4
        $region24: #{tpu_custom_call.1} parent=11 // pred_fallthru
          _
        // Predicated region
        $region25: #{tpu_custom_call.1} parent=11 // pred_check
          %p389 = pneg %p206
        $region26: #{tpu_custom_call.1} parent=11 // pred_check_branch
          %391 = sbr.rel (%p389) target = $region28
        $region27: #{tpu_custom_call.1} parent=11 // pred_region
          _
        $region28: #{tpu_custom_call.1} parent=11 // pred_fallthru
          _
        // Predicated region
        $region29: #{tpu_custom_call.1} parent=11 // pred_check
          %p392 = pneg %p227
        $region30: #{tpu_custom_call.1} parent=11 // pred_check_branch
          %394 = sbr.rel (%p392) target = $region32
        $region31: #{tpu_custom_call.1} parent=11 // pred_region
          _
        $region32: #{tpu_custom_call.1} parent=11 // pred_fallthru
          _
        // Predicated region
        $region33: #{tpu_custom_call.1} parent=11 // pred_check
          %p395 = pneg %p248
        $region34: #{tpu_custom_call.1} parent=11 // pred_check_branch
          %397 = sbr.rel (%p395) target = $region36
        $region35: #{tpu_custom_call.1} parent=11 // pred_region
          _
        $region36: #{tpu_custom_call.1} parent=11 // pred_fallthru
          _
      $region12: #{tpu_custom_call.1} parent=5 // pred_fallthru
        _
      %p398 = scmp.lt.s32.totalorder %s26, 4
      // Predicated region
      $region37: #{tpu_custom_call.1} parent=5 // pred_check
        %p399 = pneg %p398
      $region38: #{tpu_custom_call.1} parent=5 // pred_check_branch
        %401 = sbr.rel (%p399) target = $region40
      $region39: #{tpu_custom_call.1} parent=5 // pred_region
        // Predicated region
        $region41: #{tpu_custom_call.1} parent=39 // pred_check
          %p402 = pneg %p60
        $region42: #{tpu_custom_call.1} parent=39 // pred_check_branch
          %404 = sbr.rel (%p402) target = $region44
        $region43: #{tpu_custom_call.1} parent=39 // pred_region
          %s405 = sand.u32 %s50, 1
          %s406 = scalar_lea.sflag [#allocation3], %s405
          %s407 = sand.u32 %s50, 1
          %s408 = smul.addr %s407, 4
          %s409 = scalar_lea.vmem [#allocation2], %s408
          %411 = vsyncadd %s406, 0
          %s412 = smul.addr %s33, 2
          %s413 = sadd.s32 %s34, %s412
          %s414 = smul.addr %s413, 4
          %s415 = scalar_lea.hbm %s0, %s414
          %s417 = sshll.u32 %s415, 4
          %s418 = int_to_ptr.hbm [resolvable:$true] %s417
          %s419 = sshll.u32 %s409, 4
          %s420 = int_to_ptr.vmem [resolvable:$true] %s419
          %422 = dma.hbm_to_vmem [thread:$0]  %s418, 64, %s420, %s406
        $region44: #{tpu_custom_call.1} parent=39 // pred_fallthru
          _
        // Predicated region
        $region45: #{tpu_custom_call.1} parent=39 // pred_check
          %p423 = pneg %p88
        $region46: #{tpu_custom_call.1} parent=39 // pred_check_branch
          %425 = sbr.rel (%p423) target = $region48
        $region47: #{tpu_custom_call.1} parent=39 // pred_region
          %s426 = sand.u32 %s26, 1
          %s427 = scalar_lea.sflag [#allocation5], %s426
          %s428 = sand.u32 %s78, 1
          %s429 = smul.addr %s428, 4
          %s430 = scalar_lea.vmem [#allocation4], %s429
          %432 = vsyncadd %s427, 0
          %s433 = smul.addr %s33, 2
          %s434 = sadd.s32 %s34, %s433
          %s435 = smul.addr %s434, 4
          %s436 = scalar_lea.hbm %s1, %s435
          %s438 = sshll.u32 %s436, 4
          %s439 = int_to_ptr.hbm [resolvable:$true] %s438
          %s440 = sshll.u32 %s430, 4
          %s441 = int_to_ptr.vmem [resolvable:$true] %s440
          %443 = dma.hbm_to_vmem [thread:$0]  %s439, 64, %s441, %s427
        $region48: #{tpu_custom_call.1} parent=39 // pred_fallthru
          _
        // Predicated region
        $region49: #{tpu_custom_call.1} parent=39 // pred_check
          %p444 = pneg %p116
        $region50: #{tpu_custom_call.1} parent=39 // pred_check_branch
          %446 = sbr.rel (%p444) target = $region52
        $region51: #{tpu_custom_call.1} parent=39 // pred_region
          %s447 = sand.u32 %s26, 1
          %s448 = scalar_lea.sflag [#allocation5], %s447
          %s449 = sand.u32 %s106, 1
          %s450 = smul.addr %s449, 4
          %s451 = scalar_lea.vmem [#allocation6], %s450
          %453 = vsyncadd %s448, 0
          %s454 = smul.addr %s33, 2
          %s455 = sadd.s32 %s34, %s454
          %s456 = smul.addr %s455, 4
          %s457 = scalar_lea.hbm %s2, %s456
          %s459 = sshll.u32 %s457, 4
          %s460 = int_to_ptr.hbm [resolvable:$true] %s459
          %s461 = sshll.u32 %s451, 4
          %s462 = int_to_ptr.vmem [resolvable:$true] %s461
          %464 = dma.hbm_to_vmem [thread:$0]  %s460, 64, %s462, %s448
        $region52: #{tpu_custom_call.1} parent=39 // pred_fallthru
          _
      $region40: #{tpu_custom_call.1} parent=5 // pred_fallthru
        _
      %p465 = scmp.le.s32.totalorder 1, %s26
      %p466 = scmp.lt.s32.totalorder %s26, 5
      %p467 = pnand %p465, %p466
      %p468 = pneg %p467
      // Predicated region
      $region53: #{tpu_custom_call.1} parent=5 // pred_check
        _
      $region54: #{tpu_custom_call.1} parent=5 // pred_check_branch
        %470 = sbr.rel (%p467) target = $region56
      $region55: #{tpu_custom_call.1} parent=5 // pred_region
        %s471 = ssub.s32 %s26, 1
        %s472 = sand.u32 %s53, 1
        %s473 = scalar_lea.sflag [#allocation3], %s472
        %s474 = sand.u32 %s53, 1
        %s475 = smul.addr %s474, 4
        %s476 = scalar_lea.vmem [#allocation2], %s475
        // Predicated region
        $region57: #{tpu_custom_call.1} parent=55 // pred_check
          %p477 = pneg %p66
        $region58: #{tpu_custom_call.1} parent=55 // pred_check_branch
          %479 = sbr.rel (%p477) target = $region60
        $region59: #{tpu_custom_call.1} parent=55 // pred_region
          %481 = dma.done %s473, 64
        $region60: #{tpu_custom_call.1} parent=55 // pred_fallthru
          _
        %s482 = sand.u32 %s31, 1
        %s483 = scalar_lea.sflag [#allocation5], %s482
        %s484 = sand.u32 %s81, 1
        %s485 = smul.addr %s484, 4
        %s486 = scalar_lea.vmem [#allocation4], %s485
        // Predicated region
        $region61: #{tpu_custom_call.1} parent=55 // pred_check
          %p487 = pneg %p94
        $region62: #{tpu_custom_call.1} parent=55 // pred_check_branch
          %489 = sbr.rel (%p487) target = $region64
        $region63: #{tpu_custom_call.1} parent=55 // pred_region
          %491 = dma.done %s483, 64
        $region64: #{tpu_custom_call.1} parent=55 // pred_fallthru
          _
        %s492 = sand.u32 %s31, 1
        %s493 = scalar_lea.sflag [#allocation5], %s492
        %s494 = sand.u32 %s109, 1
        %s495 = smul.addr %s494, 4
        %s496 = scalar_lea.vmem [#allocation6], %s495
        // Predicated region
        $region65: #{tpu_custom_call.1} parent=55 // pred_check
          %p497 = pneg %p122
        $region66: #{tpu_custom_call.1} parent=55 // pred_check_branch
          %499 = sbr.rel (%p497) target = $region68
        $region67: #{tpu_custom_call.1} parent=55 // pred_region
          %501 = dma.done %s493, 64
        $region68: #{tpu_custom_call.1} parent=55 // pred_fallthru
          _
        // Predicated region
        $region69: #{tpu_custom_call.1} parent=55 // pred_check
          %p502 = pneg %p143
        $region70: #{tpu_custom_call.1} parent=55 // pred_check_branch
          %504 = sbr.rel (%p502) target = $region72
        $region71: #{tpu_custom_call.1} parent=55 // pred_region
          %506 = dma.done [#allocation8], 256
        $region72: #{tpu_custom_call.1} parent=55 // pred_fallthru
          _
        // Predicated region
        $region73: #{tpu_custom_call.1} parent=55 // pred_check
          %p507 = pneg %p164
        $region74: #{tpu_custom_call.1} parent=55 // pred_check_branch
          %509 = sbr.rel (%p507) target = $region76
        $region75: #{tpu_custom_call.1} parent=55 // pred_region
          %511 = dma.done [#allocation8], 256
        $region76: #{tpu_custom_call.1} parent=55 // pred_fallthru
          _
        // Predicated region
        $region77: #{tpu_custom_call.1} parent=55 // pred_check
          %p512 = pneg %p185
        $region78: #{tpu_custom_call.1} parent=55 // pred_check_branch
          %514 = sbr.rel (%p512) target = $region80
        $region79: #{tpu_custom_call.1} parent=55 // pred_region
          %516 = dma.done [#allocation11], 256
        $region80: #{tpu_custom_call.1} parent=55 // pred_fallthru
          _
        %s517 = sand.u32 %s53, 1
        %s518 = scalar_lea.sflag [#allocation3], %s517
        %s519 = sand.u32 %s53, 1
        %s520 = smul.addr %s519, 4
        %s521 = scalar_lea.vmem [#allocation2], %s520
        %p522 = pneg %p66
        %p523 = pneg %p63
        %s524 = sand.u32 %s31, 1
        %s525 = scalar_lea.sflag [#allocation5], %s524
        %s526 = sand.u32 %s81, 1
        %s527 = smul.addr %s526, 4
        %s528 = scalar_lea.vmem [#allocation4], %s527
        %p529 = pneg %p94
        %p530 = pneg %p91
        %s531 = sand.u32 %s31, 1
        %s532 = scalar_lea.sflag [#allocation5], %s531
        %s533 = sand.u32 %s109, 1
        %s534 = smul.addr %s533, 4
        %s535 = scalar_lea.vmem [#allocation6], %s534
        %p536 = pneg %p122
        %p537 = pneg %p119
        %p538 = pneg %p143
        %p539 = pneg %p140
        %p540 = pneg %p164
        %p541 = pneg %p161
        %p542 = pneg %p185
        %p543 = pneg %p182
        %p544 = pneg %p206
        %p545 = pneg %p203
        %p546 = pneg %p227
        %p547 = pneg %p224
        %p548 = pneg %p248
        %p549 = pneg %p245
        %p550 = pneg %p276
        %p551 = pneg %p273
        %s552 = sand.u32 %s263, 1
        %s553 = sand.u32 %s263, 1
        %s554 = smul.addr %s553, 16
        %s555 = scalar_lea.vmem [#allocation12], %s554
        %p556 = pneg %p304
        %p557 = pneg %p301
        %s558 = sand.u32 %s291, 1
        %s559 = sand.u32 %s291, 1
        %s560 = smul.addr %s559, 16
        %s561 = scalar_lea.vmem [#allocation13], %s560
        %p562 = pneg %p332
        %p563 = pneg %p329
        %s564 = sand.u32 %s319, 1
        %s565 = sand.u32 %s319, 1
        %s566 = smul.addr %s565, 16
        %s567 = scalar_lea.vmem [#allocation14], %s566
        %v569 = vld [vmem:[%s476] sm:$0xf]
        %v570 = vld [vmem:[#allocation7] sm:$0xf]
        %v571 = vld [vmem:[#allocation7 + $0x4] sm:$0xf]
        %v572 = vld [vmem:[#allocation7 + $0x8] sm:$0xf]
        %v573 = vld [vmem:[#allocation7 + $0xc] sm:$0xf]
        %v574 = vld [vmem:[%s6] sm:$0x1]
        %v576 = vperm.slane %v574, 0
        %v582 = vunpack.c.l.b16 %v570
        %v583 = vunpack.c.l.b16 %v571
        %v584 = vunpack.c.l.b16 %v572
        %v585 = vunpack.c.l.b16 %v573
        %v586 = vpack.c.b16 %v583, %v582
        %v587 = vpack.c.b16 %v585, %v584
        %vm590 = vcmask 261120
        %v592 = vsel %vm590, %v569, 0
        %594 = vmatpush.bf16.msra.mxu0 0
        %595 = vmatpush.bf16.msra.mxu0 0
        %596 = vmatpush.bf16.msra.mxu0 0
        %597 = vmatpush.bf16.msra.mxu0 0
        %598 = vmatpush.bf16.msra.mxu0 0
        %599 = vmatpush.bf16.msra.mxu0 0
        %600 = vmatpush.bf16.msra.mxu0 %v587
        %601 = vmatpush.bf16.msra.mxu0 %v586
        %602 = vmatmul.bf16.gmra.mxu0 %v592
        %v603 = vpop.f32.mrf.mxu0
        %v604 = vadd.f32 %v576, %v603
        %v605 = vpop.f32.mrf.mxu0
        %606 = vdwg.mxu0
        %v607 = vld [vmem:[%s486] sm:$0xf]
        %v608 = vld [vmem:[#allocation9] sm:$0xf]
        %v609 = vld [vmem:[#allocation9 + $0x4] sm:$0xf]
        %v610 = vld [vmem:[#allocation9 + $0x8] sm:$0xf]
        %v611 = vld [vmem:[#allocation9 + $0xc] sm:$0xf]
        %v612 = vld [vmem:[%s7] sm:$0x1]
        %v614 = vperm.slane %v612, 0
        %v620 = vunpack.c.l.b16 %v608
        %v621 = vunpack.c.l.b16 %v609
        %v622 = vunpack.c.l.b16 %v610
        %v623 = vunpack.c.l.b16 %v611
        %v624 = vpack.c.b16 %v621, %v620
        %v625 = vpack.c.b16 %v623, %v622
        %v629 = vsel %vm590, %v607, 0
        %631 = vmatpush.bf16.msra.mxu0 0
        %632 = vmatpush.bf16.msra.mxu0 0
        %633 = vmatpush.bf16.msra.mxu0 0
        %634 = vmatpush.bf16.msra.mxu0 0
        %635 = vmatpush.bf16.msra.mxu0 0
        %636 = vmatpush.bf16.msra.mxu0 0
        %637 = vmatpush.bf16.msra.mxu0 %v625
        %638 = vmatpush.bf16.msra.mxu0 %v624
        %639 = vmatmul.bf16.gmra.mxu0 %v629
        %v640 = vpop.f32.mrf.mxu0
        %v641 = vadd.f32 %v614, %v640
        %v642 = vpop.f32.mrf.mxu0
        %643 = vdwg.mxu0
        %v644 = vld [vmem:[%s496] sm:$0xf]
        %v645 = vld [vmem:[#allocation10] sm:$0xf]
        %v646 = vld [vmem:[#allocation10 + $0x4] sm:$0xf]
        %v647 = vld [vmem:[#allocation10 + $0x8] sm:$0xf]
        %v648 = vld [vmem:[#allocation10 + $0xc] sm:$0xf]
        %v649 = vld [vmem:[%s8] sm:$0x1]
        %v651 = vperm.slane %v649, 0
        %v657 = vunpack.c.l.b16 %v645
        %v658 = vunpack.c.l.b16 %v646
        %v659 = vunpack.c.l.b16 %v647
        %v660 = vunpack.c.l.b16 %v648
        %v661 = vpack.c.b16 %v658, %v657
        %v662 = vpack.c.b16 %v660, %v659
        %v666 = vsel %vm590, %v644, 0
        %668 = vmatpush.bf16.msra.mxu0 0
        %669 = vmatpush.bf16.msra.mxu0 0
        %670 = vmatpush.bf16.msra.mxu0 0
        %671 = vmatpush.bf16.msra.mxu0 0
        %672 = vmatpush.bf16.msra.mxu0 0
        %673 = vmatpush.bf16.msra.mxu0 0
        %674 = vmatpush.bf16.msra.mxu0 %v662
        %675 = vmatpush.bf16.msra.mxu0 %v661
        %676 = vmatmul.bf16.gmra.mxu0 %v666
        %v677 = vpop.f32.mrf.mxu0
        %v678 = vadd.f32 %v651, %v677
        %v679 = vpop.f32.mrf.mxu0
        %680 = vdwg.mxu0
        %v681 = vpack.c.bf16 %v604, %v604
        %v682 = vpack.c.bf16 %v641, %v641
        %v683 = vpack.c.bf16 %v678, %v678
        %vm684 = vcmask 60416
        %685 = vst.msk [vmem:[%s555] sm:$0xf] %vm684, %v681
        %686 = vst.msk [vmem:[%s561] sm:$0xf] %vm684, %v682
        %687 = vst.msk [vmem:[%s567] sm:$0xf] %vm684, %v683
        %689 = vrot.lane.b32.xlu0 %v681, 120
        %v690 = vpop.permute.xlu0 %689
        %s692 = scalar_lea.vmem %s555, 4 [#allocation12]
        %693 = vst.msk [vmem:[%s692] sm:$0xf] %vm684, %v690
        %695 = vrot.lane.b32.xlu0 %v682, 120
        %v696 = vpop.permute.xlu0 %695
        %s698 = scalar_lea.vmem %s561, 4 [#allocation13]
        %699 = vst.msk [vmem:[%s698] sm:$0xf] %vm684, %v696
        %701 = vrot.lane.b32.xlu0 %v683, 120
        %v702 = vpop.permute.xlu0 %701
        %s704 = scalar_lea.vmem %s567, 4 [#allocation14]
        %705 = vst.msk [vmem:[%s704] sm:$0xf] %vm684, %v702
        %706 = vrot.lane.b32.xlu0 %v681, 112
        %v707 = vpop.permute.xlu0 %706
        %s709 = scalar_lea.vmem %s555, 8 [#allocation12]
        %710 = vst.msk [vmem:[%s709] sm:$0xf] %vm684, %v707
        %711 = vrot.lane.b32.xlu0 %v682, 112
        %v712 = vpop.permute.xlu0 %711
        %s714 = scalar_lea.vmem %s561, 8 [#allocation13]
        %715 = vst.msk [vmem:[%s714] sm:$0xf] %vm684, %v712
        %716 = vrot.lane.b32.xlu0 %v683, 112
        %v717 = vpop.permute.xlu0 %716
        %s719 = scalar_lea.vmem %s567, 8 [#allocation14]
        %720 = vst.msk [vmem:[%s719] sm:$0xf] %vm684, %v717
        %721 = vrot.lane.b32.xlu0 %v681, 104
        %v722 = vpop.permute.xlu0 %721
        %s724 = scalar_lea.vmem %s555, 12 [#allocation12]
        %725 = vst.msk [vmem:[%s724] sm:$0xf] %vm684, %v722
        %726 = vrot.lane.b32.xlu0 %v682, 104
        %v727 = vpop.permute.xlu0 %726
        %s729 = scalar_lea.vmem %s561, 12 [#allocation13]
        %730 = vst.msk [vmem:[%s729] sm:$0xf] %vm684, %v727
        %731 = vrot.lane.b32.xlu0 %v683, 104
        %v732 = vpop.permute.xlu0 %731
        %s734 = scalar_lea.vmem %s567, 12 [#allocation14]
        %735 = vst.msk [vmem:[%s734] sm:$0xf] %vm684, %v732
        %s736 = sand.u32 %s263, 1
        %s737 = sand.u32 %s263, 1
        %s738 = smul.addr %s737, 16
        %s739 = scalar_lea.vmem [#allocation12], %s738
        %s740 = sand.u32 %s291, 1
        %s741 = sand.u32 %s291, 1
        %s742 = smul.addr %s741, 16
        %s743 = scalar_lea.vmem [#allocation13], %s742
        %s744 = sand.u32 %s319, 1
        %s745 = sand.u32 %s319, 1
        %s746 = smul.addr %s745, 16
        %s747 = scalar_lea.vmem [#allocation14], %s746
        // Predicated region
        $region81: #{tpu_custom_call.1} parent=55 // pred_check
          %p748 = pneg %p273
        $region82: #{tpu_custom_call.1} parent=55 // pred_check_branch
          %750 = sbr.rel (%p748) target = $region84
        $region83: #{tpu_custom_call.1} parent=55 // pred_region
          %s751 = smul.addr %s35, 8
          %s752 = sadd.s32 %s36, %s751
          %s753 = smul.addr %s752, 4
          %s754 = scalar_lea.vmem %s9, %s753
          // Predicated region
          $region85: #{tpu_custom_call.1} parent=83 // pred_check
            _
          $region86: #{tpu_custom_call.1} parent=83 // pred_check_branch
            %756 = sbr.rel (0) target = $region88
          $region87: #{tpu_custom_call.1} parent=83 // pred_region
            // Predicated region
            $region89: #{tpu_custom_call.1} parent=87 // pred_check
              _
            $region90: #{tpu_custom_call.1} parent=87 // pred_check_branch
              %758 = sbr.rel target = $region92
            $region91: #{tpu_custom_call.1} parent=87 // pred_region
              // Predicated region
              $region104: #{tpu_custom_call.1} parent=91 // pred_check
                _
              $region105: #{tpu_custom_call.1} parent=91 // pred_check_branch
                %780 = sbr.rel (0) target = $region107
              $region106: #{tpu_custom_call.1} parent=91 // pred_region
                loop: start=0, step=1, limit=1
                $region108: #{tpu_custom_call.1} parent=106 // loop_pre_header
                  _
                $region109: #{tpu_custom_call.1} parent=106 // loop_header
                  %s782 = sphi 0, %s786
                  %p783 = scmp.ge.s32.totalorder %s782, 1
                  %s787 = sphi %s739, %s739
                  %s788 = sphi %s754, %s754
                $region110: #{tpu_custom_call.1} parent=106 // loop_header_branch
                  %785 = sbr.rel (%p783) target = $region114
                $region111: #{tpu_custom_call.1} parent=106 // loop_body
                  _
                $region112: #{tpu_custom_call.1} parent=106 // loop_footer
                  %s786 = sadd.s32 1, %s782
                $region113: #{tpu_custom_call.1} parent=106 // loop_footer_branch
                  %781 = sbr.rel target = $region109
                $region114: #{tpu_custom_call.1} parent=106 // loop_exit
                  _
                %s790 = ssub.s32 16, 1
                loop: start=0, step=1, limit=1
                $region115: #{tpu_custom_call.1} parent=106 // loop_pre_header
                  _
                $region116: #{tpu_custom_call.1} parent=106 // loop_header
                  %s792 = sphi 0, %s796
                  %p793 = scmp.ge.s32.totalorder %s792, 1
                  %s797 = sphi %s739, %s739
                  %s798 = sphi %s754, %s754
                $region117: #{tpu_custom_call.1} parent=106 // loop_header_branch
                  %795 = sbr.rel (%p793) target = $region121
                $region118: #{tpu_custom_call.1} parent=106 // loop_body
                  %v799 = vld [vmem:[%s797] sm:%s790]
                  %800 = vst [vmem:[%s798] sm:%s790] %v799
                  %v801 = vld [vmem:[%s797 + $0x4] sm:%s790]
                  %802 = vst [vmem:[%s798 + $0x8] sm:%s790] %v801
                  %v803 = vld [vmem:[%s797 + $0x8] sm:%s790]
                  %804 = vst [vmem:[%s798 + $0x10] sm:%s790] %v803
                  %v805 = vld [vmem:[%s797 + $0xc] sm:%s790]
                  %806 = vst [vmem:[%s798 + $0x18] sm:%s790] %v805
                $region119: #{tpu_custom_call.1} parent=106 // loop_footer
                  %s796 = sadd.s32 1, %s792
                $region120: #{tpu_custom_call.1} parent=106 // loop_footer_branch
                  %791 = sbr.rel target = $region116
                $region121: #{tpu_custom_call.1} parent=106 // loop_exit
                  _
              $region107: #{tpu_custom_call.1} parent=91 // pred_fallthru
                _
            $region92: #{tpu_custom_call.1} parent=87 // pred_fallthru
              _
            // Predicated region
            $region93: #{tpu_custom_call.1} parent=87 // pred_check
              _
            $region94: #{tpu_custom_call.1} parent=87 // pred_check_branch
              %760 = sbr.rel (0) target = $region96
            $region95: #{tpu_custom_call.1} parent=87 // pred_region
              %s762 = ssub.s32 16, 1
              loop: start=0, step=1, limit=1
              $region97: #{tpu_custom_call.1} parent=95 // loop_pre_header
                _
              $region98: #{tpu_custom_call.1} parent=95 // loop_header
                %s764 = sphi 0, %s768
                %p765 = scmp.ge.s32.totalorder %s764, 1
                %s769 = sphi %s739, %s739
                %s770 = sphi %s754, %s754
              $region99: #{tpu_custom_call.1} parent=95 // loop_header_branch
                %767 = sbr.rel (%p765) target = $region103
              $region100: #{tpu_custom_call.1} parent=95 // loop_body
                %v771 = vld [vmem:[%s769] sm:%s762]
                %772 = vst [vmem:[%s770] sm:%s762] %v771
                %v773 = vld [vmem:[%s769 + $0x4] sm:%s762]
                %774 = vst [vmem:[%s770 + $0x8] sm:%s762] %v773
                %v775 = vld [vmem:[%s769 + $0x8] sm:%s762]
                %776 = vst [vmem:[%s770 + $0x10] sm:%s762] %v775
                %v777 = vld [vmem:[%s769 + $0xc] sm:%s762]
                %778 = vst [vmem:[%s770 + $0x18] sm:%s762] %v777
              $region101: #{tpu_custom_call.1} parent=95 // loop_footer
                %s768 = sadd.s32 1, %s764
              $region102: #{tpu_custom_call.1} parent=95 // loop_footer_branch
                %763 = sbr.rel target = $region98
              $region103: #{tpu_custom_call.1} parent=95 // loop_exit
                _
            $region96: #{tpu_custom_call.1} parent=87 // pred_fallthru
              _
          $region88: #{tpu_custom_call.1} parent=83 // pred_fallthru
            _
          %807 = vnop
        $region84: #{tpu_custom_call.1} parent=55 // pred_fallthru
          _
        // Predicated region
        $region122: #{tpu_custom_call.1} parent=55 // pred_check
          %p808 = pneg %p301
        $region123: #{tpu_custom_call.1} parent=55 // pred_check_branch
          %810 = sbr.rel (%p808) target = $region125
        $region124: #{tpu_custom_call.1} parent=55 // pred_region
          %s811 = smul.addr %s35, 8
          %s812 = sadd.s32 %s36, %s811
          %s813 = smul.addr %s812, 4
          %s814 = scalar_lea.vmem %s10, %s813
          // Predicated region
          $region126: #{tpu_custom_call.1} parent=124 // pred_check
            _
          $region127: #{tpu_custom_call.1} parent=124 // pred_check_branch
            %816 = sbr.rel (0) target = $region129
          $region128: #{tpu_custom_call.1} parent=124 // pred_region
            // Predicated region
            $region130: #{tpu_custom_call.1} parent=128 // pred_check
              _
            $region131: #{tpu_custom_call.1} parent=128 // pred_check_branch
              %818 = sbr.rel target = $region133
            $region132: #{tpu_custom_call.1} parent=128 // pred_region
              // Predicated region
              $region145: #{tpu_custom_call.1} parent=132 // pred_check
                _
              $region146: #{tpu_custom_call.1} parent=132 // pred_check_branch
                %840 = sbr.rel (0) target = $region148
              $region147: #{tpu_custom_call.1} parent=132 // pred_region
                loop: start=0, step=1, limit=1
                $region149: #{tpu_custom_call.1} parent=147 // loop_pre_header
                  _
                $region150: #{tpu_custom_call.1} parent=147 // loop_header
                  %s842 = sphi 0, %s846
                  %p843 = scmp.ge.s32.totalorder %s842, 1
                  %s847 = sphi %s743, %s743
                  %s848 = sphi %s814, %s814
                $region151: #{tpu_custom_call.1} parent=147 // loop_header_branch
                  %845 = sbr.rel (%p843) target = $region155
                $region152: #{tpu_custom_call.1} parent=147 // loop_body
                  _
                $region153: #{tpu_custom_call.1} parent=147 // loop_footer
                  %s846 = sadd.s32 1, %s842
                $region154: #{tpu_custom_call.1} parent=147 // loop_footer_branch
                  %841 = sbr.rel target = $region150
                $region155: #{tpu_custom_call.1} parent=147 // loop_exit
                  _
                %s850 = ssub.s32 16, 1
                loop: start=0, step=1, limit=1
                $region156: #{tpu_custom_call.1} parent=147 // loop_pre_header
                  _
                $region157: #{tpu_custom_call.1} parent=147 // loop_header
                  %s852 = sphi 0, %s856
                  %p853 = scmp.ge.s32.totalorder %s852, 1
                  %s857 = sphi %s743, %s743
                  %s858 = sphi %s814, %s814
                $region158: #{tpu_custom_call.1} parent=147 // loop_header_branch
                  %855 = sbr.rel (%p853) target = $region162
                $region159: #{tpu_custom_call.1} parent=147 // loop_body
                  %v859 = vld [vmem:[%s857] sm:%s850]
                  %860 = vst [vmem:[%s858] sm:%s850] %v859
                  %v861 = vld [vmem:[%s857 + $0x4] sm:%s850]
                  %862 = vst [vmem:[%s858 + $0x8] sm:%s850] %v861
                  %v863 = vld [vmem:[%s857 + $0x8] sm:%s850]
                  %864 = vst [vmem:[%s858 + $0x10] sm:%s850] %v863
                  %v865 = vld [vmem:[%s857 + $0xc] sm:%s850]
                  %866 = vst [vmem:[%s858 + $0x18] sm:%s850] %v865
                $region160: #{tpu_custom_call.1} parent=147 // loop_footer
                  %s856 = sadd.s32 1, %s852
                $region161: #{tpu_custom_call.1} parent=147 // loop_footer_branch
                  %851 = sbr.rel target = $region157
                $region162: #{tpu_custom_call.1} parent=147 // loop_exit
                  _
              $region148: #{tpu_custom_call.1} parent=132 // pred_fallthru
                _
            $region133: #{tpu_custom_call.1} parent=128 // pred_fallthru
              _
            // Predicated region
            $region134: #{tpu_custom_call.1} parent=128 // pred_check
              _
            $region135: #{tpu_custom_call.1} parent=128 // pred_check_branch
              %820 = sbr.rel (0) target = $region137
            $region136: #{tpu_custom_call.1} parent=128 // pred_region
              %s822 = ssub.s32 16, 1
              loop: start=0, step=1, limit=1
              $region138: #{tpu_custom_call.1} parent=136 // loop_pre_header
                _
              $region139: #{tpu_custom_call.1} parent=136 // loop_header
                %s824 = sphi 0, %s828
                %p825 = scmp.ge.s32.totalorder %s824, 1
                %s829 = sphi %s743, %s743
                %s830 = sphi %s814, %s814
              $region140: #{tpu_custom_call.1} parent=136 // loop_header_branch
                %827 = sbr.rel (%p825) target = $region144
              $region141: #{tpu_custom_call.1} parent=136 // loop_body
                %v831 = vld [vmem:[%s829] sm:%s822]
                %832 = vst [vmem:[%s830] sm:%s822] %v831
                %v833 = vld [vmem:[%s829 + $0x4] sm:%s822]
                %834 = vst [vmem:[%s830 + $0x8] sm:%s822] %v833
                %v835 = vld [vmem:[%s829 + $0x8] sm:%s822]
                %836 = vst [vmem:[%s830 + $0x10] sm:%s822] %v835
                %v837 = vld [vmem:[%s829 + $0xc] sm:%s822]
                %838 = vst [vmem:[%s830 + $0x18] sm:%s822] %v837
              $region142: #{tpu_custom_call.1} parent=136 // loop_footer
                %s828 = sadd.s32 1, %s824
              $region143: #{tpu_custom_call.1} parent=136 // loop_footer_branch
                %823 = sbr.rel target = $region139
              $region144: #{tpu_custom_call.1} parent=136 // loop_exit
                _
            $region137: #{tpu_custom_call.1} parent=128 // pred_fallthru
              _
          $region129: #{tpu_custom_call.1} parent=124 // pred_fallthru
            _
          %867 = vnop
        $region125: #{tpu_custom_call.1} parent=55 // pred_fallthru
          _
        // Predicated region
        $region163: #{tpu_custom_call.1} parent=55 // pred_check
          %p868 = pneg %p329
        $region164: #{tpu_custom_call.1} parent=55 // pred_check_branch
          %870 = sbr.rel (%p868) target = $region166
        $region165: #{tpu_custom_call.1} parent=55 // pred_region
          %s871 = smul.addr %s35, 8
          %s872 = sadd.s32 %s36, %s871
          %s873 = smul.addr %s872, 4
          %s874 = scalar_lea.vmem %s11, %s873
          // Predicated region
          $region167: #{tpu_custom_call.1} parent=165 // pred_check
            _
          $region168: #{tpu_custom_call.1} parent=165 // pred_check_branch
            %876 = sbr.rel (0) target = $region170
          $region169: #{tpu_custom_call.1} parent=165 // pred_region
            // Predicated region
            $region171: #{tpu_custom_call.1} parent=169 // pred_check
              _
            $region172: #{tpu_custom_call.1} parent=169 // pred_check_branch
              %878 = sbr.rel target = $region174
            $region173: #{tpu_custom_call.1} parent=169 // pred_region
              // Predicated region
              $region186: #{tpu_custom_call.1} parent=173 // pred_check
                _
              $region187: #{tpu_custom_call.1} parent=173 // pred_check_branch
                %900 = sbr.rel (0) target = $region189
              $region188: #{tpu_custom_call.1} parent=173 // pred_region
                loop: start=0, step=1, limit=1
                $region190: #{tpu_custom_call.1} parent=188 // loop_pre_header
                  _
                $region191: #{tpu_custom_call.1} parent=188 // loop_header
                  %s902 = sphi 0, %s906
                  %p903 = scmp.ge.s32.totalorder %s902, 1
                  %s907 = sphi %s747, %s747
                  %s908 = sphi %s874, %s874
                $region192: #{tpu_custom_call.1} parent=188 // loop_header_branch
                  %905 = sbr.rel (%p903) target = $region196
                $region193: #{tpu_custom_call.1} parent=188 // loop_body
                  _
                $region194: #{tpu_custom_call.1} parent=188 // loop_footer
                  %s906 = sadd.s32 1, %s902
                $region195: #{tpu_custom_call.1} parent=188 // loop_footer_branch
                  %901 = sbr.rel target = $region191
                $region196: #{tpu_custom_call.1} parent=188 // loop_exit
                  _
                %s910 = ssub.s32 16, 1
                loop: start=0, step=1, limit=1
                $region197: #{tpu_custom_call.1} parent=188 // loop_pre_header
                  _
                $region198: #{tpu_custom_call.1} parent=188 // loop_header
                  %s912 = sphi 0, %s916
                  %p913 = scmp.ge.s32.totalorder %s912, 1
                  %s917 = sphi %s747, %s747
                  %s918 = sphi %s874, %s874
                $region199: #{tpu_custom_call.1} parent=188 // loop_header_branch
                  %915 = sbr.rel (%p913) target = $region203
                $region200: #{tpu_custom_call.1} parent=188 // loop_body
                  %v919 = vld [vmem:[%s917] sm:%s910]
                  %920 = vst [vmem:[%s918] sm:%s910] %v919
                  %v921 = vld [vmem:[%s917 + $0x4] sm:%s910]
                  %922 = vst [vmem:[%s918 + $0x8] sm:%s910] %v921
                  %v923 = vld [vmem:[%s917 + $0x8] sm:%s910]
                  %924 = vst [vmem:[%s918 + $0x10] sm:%s910] %v923
                  %v925 = vld [vmem:[%s917 + $0xc] sm:%s910]
                  %926 = vst [vmem:[%s918 + $0x18] sm:%s910] %v925
                $region201: #{tpu_custom_call.1} parent=188 // loop_footer
                  %s916 = sadd.s32 1, %s912
                $region202: #{tpu_custom_call.1} parent=188 // loop_footer_branch
                  %911 = sbr.rel target = $region198
                $region203: #{tpu_custom_call.1} parent=188 // loop_exit
                  _
              $region189: #{tpu_custom_call.1} parent=173 // pred_fallthru
                _
            $region174: #{tpu_custom_call.1} parent=169 // pred_fallthru
              _
            // Predicated region
            $region175: #{tpu_custom_call.1} parent=169 // pred_check
              _
            $region176: #{tpu_custom_call.1} parent=169 // pred_check_branch
              %880 = sbr.rel (0) target = $region178
            $region177: #{tpu_custom_call.1} parent=169 // pred_region
              %s882 = ssub.s32 16, 1
              loop: start=0, step=1, limit=1
              $region179: #{tpu_custom_call.1} parent=177 // loop_pre_header
                _
              $region180: #{tpu_custom_call.1} parent=177 // loop_header
                %s884 = sphi 0, %s888
                %p885 = scmp.ge.s32.totalorder %s884, 1
                %s889 = sphi %s747, %s747
                %s890 = sphi %s874, %s874
              $region181: #{tpu_custom_call.1} parent=177 // loop_header_branch
                %887 = sbr.rel (%p885) target = $region185
              $region182: #{tpu_custom_call.1} parent=177 // loop_body
                %v891 = vld [vmem:[%s889] sm:%s882]
                %892 = vst [vmem:[%s890] sm:%s882] %v891
                %v893 = vld [vmem:[%s889 + $0x4] sm:%s882]
                %894 = vst [vmem:[%s890 + $0x8] sm:%s882] %v893
                %v895 = vld [vmem:[%s889 + $0x8] sm:%s882]
                %896 = vst [vmem:[%s890 + $0x10] sm:%s882] %v895
                %v897 = vld [vmem:[%s889 + $0xc] sm:%s882]
                %898 = vst [vmem:[%s890 + $0x18] sm:%s882] %v897
              $region183: #{tpu_custom_call.1} parent=177 // loop_footer
                %s888 = sadd.s32 1, %s884
              $region184: #{tpu_custom_call.1} parent=177 // loop_footer_branch
                %883 = sbr.rel target = $region180
              $region185: #{tpu_custom_call.1} parent=177 // loop_exit
                _
            $region178: #{tpu_custom_call.1} parent=169 // pred_fallthru
              _
          $region170: #{tpu_custom_call.1} parent=165 // pred_fallthru
            _
          %927 = vnop
        $region166: #{tpu_custom_call.1} parent=55 // pred_fallthru
          _
      $region56: #{tpu_custom_call.1} parent=5 // pred_fallthru
        _
      %p928 = scmp.le.s32.totalorder 2, %s26
      // Predicated region
      $region204: #{tpu_custom_call.1} parent=5 // pred_check
        %p929 = pneg %p928
      $region205: #{tpu_custom_call.1} parent=5 // pred_check_branch
        %931 = sbr.rel (%p929) target = $region207
      $region206: #{tpu_custom_call.1} parent=5 // pred_region
        %s932 = ssub.s32 %s26, 2
        // Predicated region
        $region208: #{tpu_custom_call.1} parent=206 // pred_check
          %p933 = pneg %p279
        $region209: #{tpu_custom_call.1} parent=206 // pred_check_branch
          %935 = sbr.rel (%p933) target = $region211
        $region210: #{tpu_custom_call.1} parent=206 // pred_region
          %s936 = sand.u32 %s264, 1
          %s937 = sand.u32 %s264, 1
          %s938 = smul.addr %s937, 16
          %s939 = scalar_lea.vmem [#allocation12], %s938
        $region211: #{tpu_custom_call.1} parent=206 // pred_fallthru
          _
        // Predicated region
        $region212: #{tpu_custom_call.1} parent=206 // pred_check
          %p940 = pneg %p307
        $region213: #{tpu_custom_call.1} parent=206 // pred_check_branch
          %942 = sbr.rel (%p940) target = $region215
        $region214: #{tpu_custom_call.1} parent=206 // pred_region
          %s943 = sand.u32 %s292, 1
          %s944 = sand.u32 %s292, 1
          %s945 = smul.addr %s944, 16
          %s946 = scalar_lea.vmem [#allocation13], %s945
        $region215: #{tpu_custom_call.1} parent=206 // pred_fallthru
          _
        // Predicated region
        $region216: #{tpu_custom_call.1} parent=206 // pred_check
          %p947 = pneg %p335
        $region217: #{tpu_custom_call.1} parent=206 // pred_check_branch
          %949 = sbr.rel (%p947) target = $region219
        $region218: #{tpu_custom_call.1} parent=206 // pred_region
          %s950 = sand.u32 %s320, 1
          %s951 = sand.u32 %s320, 1
          %s952 = smul.addr %s951, 16
          %s953 = scalar_lea.vmem [#allocation14], %s952
        $region219: #{tpu_custom_call.1} parent=206 // pred_fallthru
          _
      $region207: #{tpu_custom_call.1} parent=5 // pred_fallthru
        _
    $region6: #{tpu_custom_call.1} parent=1 // loop_footer
      %s30 = sadd.s32 1, %s26
    $region7: #{tpu_custom_call.1} parent=1 // loop_footer_branch
      %25 = sbr.rel target = $region3
    $region8: #{tpu_custom_call.1} parent=1 // loop_exit
      _
    %954 = vsyncpa [#allocation3], 1
    %s955 = scalar_lea.sflag [#allocation3], 1
    %956 = vsyncpa %s955, 1
    %957 = vsyncpa [#allocation5], 1
    %s958 = scalar_lea.sflag [#allocation5], 1
    %959 = vsyncpa %s958, 1
    %960 = vsyncpa [#allocation8], 1
    %961 = vsyncpa [#allocation11], 1

</llo_original>
